<compile_context>
chip_gen: v7x
topology: tpu7x:2x2x1
jax: 0.10.0
libtpu: 0.0.40
codegen_flags: <defaults>
</compile_context>

<pallas_src>
import jax
import jax.numpy as jnp
from jax.experimental import pallas as pl
from jax.experimental.pallas import tpu as pltpu


# ---------------------------------------------------------------------------
# Fused decoder kernel: all LSTM layers + final Linear in one kernel body.
# Gate order matches PyTorch nn.LSTM: i, f, g, o.
# ---------------------------------------------------------------------------
def _build_decoder_kernel(num_layers, S, Bp, H):
    H4 = 4 * H
    T = S - 1

    def kernel(*args):
        # ---- unpack refs: inputs | output | scratch -------------------------
        x_ref = args[0]                                   # (S*Bp, E)
        idx = 1
        layer_refs = []
        for _ in range(num_layers):
            layer_refs.append((args[idx], args[idx + 1], args[idx + 2]))
            idx += 3
        lin_w_ref, lin_b_ref = args[idx], args[idx + 1]   # (H, Vp), (1, Vp)
        idx += 2
        out_ref = args[idx]                               # (T*Bp, Vp)
        idx += 1
        xproj_ref = args[idx]                             # (S*Bp, 4H) scratch
        idx += 1
        seq_refs = args[idx: idx + num_layers]            # num_layers x (S*Bp, H)

        # Lane mask for the g-gate lanes [2H, 3H): tanh there, sigmoid elsewhere.
        lane = jax.lax.broadcasted_iota(jnp.int32, (Bp, H4), 1)
        g_mask = jnp.logical_and(lane >= 2 * H, lane < 3 * H)

        cur = x_ref[...]                                  # (S*Bp, in_dim)
        for l in range(num_layers):
            w_ih_ref, w_hh_ref, b_ref = layer_refs[l]
            # Hoisted, time-parallel input projection for the whole sequence.
            xproj_ref[...] = (
                jnp.dot(cur, w_ih_ref[...], preferred_element_type=jnp.float32)
                + b_ref[...]
            )
            w_hh = w_hh_ref[...]                          # resident across steps
            buf = seq_refs[l]
            last = l == num_layers - 1

            h = jnp.zeros((Bp, H), jnp.float32)
            c = jnp.zeros((Bp, H), jnp.float32)
            for t in range(S):                            # small, fully unrolled
                gates = xproj_ref[pl.ds(t * Bp, Bp), :] + jnp.dot(
                    h, w_hh, preferred_element_type=jnp.float32)
                # Single EUP pass: tanh(x) == 2*sigmoid(2x) - 1 on g lanes.
                sig = jax.nn.sigmoid(jnp.where(g_mask, 2.0 * gates, gates))
                act = jnp.where(g_mask, 2.0 * sig - 1.0, sig)
                i_g = act[:, 0 * H:1 * H]
                f_g = act[:, 1 * H:2 * H]
                g_g = act[:, 2 * H:3 * H]
                o_g = act[:, 3 * H:4 * H]
                c = f_g * c + i_g * g_g
                h = o_g * jnp.tanh(c)
                if not (last and t == 0):                 # t=0 of last layer unused
                    buf[pl.ds(t * Bp, Bp), :] = h
            if not last:
                cur = buf[...]                            # feeds next layer

        # Final linear on steps 1..S-1 of the last layer: one MXU matmul.
        hidd = seq_refs[num_layers - 1][pl.ds(Bp, T * Bp), :]    # (T*Bp, H)
        out_ref[...] = (
            jnp.dot(hidd, lin_w_ref[...], preferred_element_type=jnp.float32)
            + lin_b_ref[...]
        )

    return kernel


def _fused_decoder_call(num_layers, S, Bp, E, H, Vp):
    H4 = 4 * H
    T = S - 1
    kernel = _build_decoder_kernel(num_layers, S, Bp, H)

    in_specs = [pl.BlockSpec((S * Bp, E), lambda i: (0, 0))]
    for l in range(num_layers):
        in_dim = E if l == 0 else H
        in_specs += [
            pl.BlockSpec((in_dim, H4), lambda i: (0, 0)),
            pl.BlockSpec((H, H4), lambda i: (0, 0)),
            pl.BlockSpec((1, H4), lambda i: (0, 0)),
        ]
    in_specs += [
        pl.BlockSpec((H, Vp), lambda i: (0, 0)),
        pl.BlockSpec((1, Vp), lambda i: (0, 0)),
    ]

    scratch = [pltpu.VMEM((S * Bp, H4), jnp.float32)]           # hoisted x-projection
    scratch += [pltpu.VMEM((S * Bp, H), jnp.float32) for _ in range(num_layers)]

    return pl.pallas_call(
        kernel,
        out_shape=jax.ShapeDtypeStruct((T * Bp, Vp), jnp.float32),
        grid_spec=pltpu.PrefetchScalarGridSpec(
            num_scalar_prefetch=0,
            grid=(1,),
            in_specs=in_specs,
            out_specs=pl.BlockSpec((T * Bp, Vp), lambda i: (0, 0)),
            scratch_shapes=scratch,
        ),
        compiler_params=pltpu.CompilerParams(
            dimension_semantics=("arbitrary",),   # whole decoder is one grid step
        ),
    )


# ---------------------------------------------------------------------------
# Decoder forward (matches the PyTorch module in eval mode).
# ---------------------------------------------------------------------------
def decoder_forward(params, features, captions):
    """features: (B, E) float32; captions: (T, B) int32 -> (T, B, V) float32."""
    # Embedding lookup (glue) + dropout as identity (eval mode).
    embeddings = jnp.take(params["embed"], captions, axis=0)               # (T,B,E)
    inputs = jnp.concatenate([features[None, :, :], embeddings], axis=0)   # (S,B,E)
    S, B, E = inputs.shape
    H = params["lstm"][0]["w_hh_t"].shape[0]
    V = params["lin_w_t"].shape[1]
    num_layers = len(params["lstm"])

    Bp = ((B + 7) // 8) * 8             # sublane-aligned time steps
    Vp = ((V + 127) // 128) * 128       # lane-dense (multiple-of-128) logit stores

    inputs_p = jnp.pad(inputs, ((0, 0), (0, Bp - B), (0, 0)))
    lin_w = jnp.pad(params["lin_w_t"], ((0, 0), (0, Vp - V)))
    lin_b = jnp.pad(params["lin_b"], ((0, 0), (0, Vp - V)))

    flat_args = [inputs_p.reshape(S * Bp, E)]
    for layer in params["lstm"]:
        flat_args += [layer["w_ih_t"], layer["w_hh_t"], layer["bias"]]
    flat_args += [lin_w, lin_b]

    out2d = _fused_decoder_call(num_layers, S, Bp, E, H, Vp)(*flat_args)   # (T*Bp, Vp)
    T = S - 1
    return out2d.reshape(T, Bp, Vp)[:, :B, :V]


# ---------------------------------------------------------------------------
# Deterministic parameter init + pure-JAX reference for verification.
# ---------------------------------------------------------------------------
def init_params(key, embed_size, hidden_size, vocab_size, num_layers):
    keys = jax.random.split(key, 3 + 4 * num_layers)
    params = {
        "embed": 0.1 * jax.random.normal(keys[0], (vocab_size, embed_size), jnp.float32),
        "lin_w_t": 0.1 * jax.random.normal(keys[1], (hidden_size, vocab_size), jnp.float32),
        "lin_b": 0.1 * jax.random.normal(keys[2], (1, vocab_size), jnp.float32),
        "lstm": [],
    }
    for l in range(num_layers):
        in_dim = embed_size if l == 0 else hidden_size
        k = keys[3 + 4 * l: 3 + 4 * (l + 1)]
        params["lstm"].append({
            "w_ih_t": 0.1 * jax.random.normal(k[0], (in_dim, 4 * hidden_size), jnp.float32),
            "w_hh_t": 0.1 * jax.random.normal(k[1], (hidden_size, 4 * hidden_size), jnp.float32),
            # b_ih + b_hh combined, kept 2D for TPU layout
            "bias": 0.1 * jax.random.normal(k[2], (1, 4 * hidden_size), jnp.float32)
                    + 0.1 * jax.random.normal(k[3], (1, 4 * hidden_size), jnp.float32),
        })
    return params


def decoder_forward_ref(params, features, captions):
    """Pure-JAX reference (lax.scan LSTM) for correctness check."""
    embeddings = jnp.take(params["embed"], captions, axis=0)
    x = jnp.concatenate([features[None, :, :], embeddings], axis=0)
    B = features.shape[0]
    for layer in params["lstm"]:
        H = layer["w_hh_t"].shape[0]

        def step(carry, xt, layer=layer, H=H):
            h, c = carry
            gates = xt @ layer["w_ih_t"] + h @ layer["w_hh_t"] + layer["bias"]
            i = jax.nn.sigmoid(gates[:, 0 * H:1 * H])
            f = jax.nn.sigmoid(gates[:, 1 * H:2 * H])
            g = jnp.tanh(gates[:, 2 * H:3 * H])
            o = jax.nn.sigmoid(gates[:, 3 * H:4 * H])
            c_new = f * c + i * g
            h_new = o * jnp.tanh(c_new)
            return (h_new, c_new), h_new

        init = (jnp.zeros((B, H), jnp.float32), jnp.zeros((B, H), jnp.float32))
        _, x = jax.lax.scan(step, init, x)
    hiddens = x[1:]
    return hiddens @ params["lin_w_t"] + params["lin_b"][0]


if __name__ == "__main__":
    # Small, module-consistent shapes.
    embed_size = 32
    hidden_size = 32
    vocab_size = 40
    num_layers = 2
    batch = 4
    seq_len = 6

    key = jax.random.PRNGKey(0)
    k_param, k_feat, k_cap = jax.random.split(key, 3)

    params = init_params(k_param, embed_size, hidden_size, vocab_size, num_layers)
    features = jax.random.normal(k_feat, (batch, embed_size), jnp.float32)
    captions = jax.random.randint(k_cap, (seq_len, batch), 0, vocab_size, jnp.int32)

    fwd = jax.jit(decoder_forward)
    out = fwd(params, features, captions)
    out = jax.block_until_ready(out)

    ref = decoder_forward_ref(params, features, captions)
    assert out.shape == (seq_len, batch, vocab_size), out.shape
    assert jnp.allclose(out, ref, atol=5e-4, rtol=5e-4), "mismatch vs reference"

    print("KERNEL_OK")
</pallas_src>

<mosaic_0001>
module attributes {stable_mosaic.version = 11 : i64} {
  func.func @kernel(%arg0: i32, %arg1: memref<56x32xf32, #tpu.memory_space<vmem>>, %arg2: memref<32x128xf32, #tpu.memory_space<vmem>>, %arg3: memref<32x128xf32, #tpu.memory_space<vmem>>, %arg4: memref<1x128xf32, #tpu.memory_space<vmem>>, %arg5: memref<32x128xf32, #tpu.memory_space<vmem>>, %arg6: memref<32x128xf32, #tpu.memory_space<vmem>>, %arg7: memref<1x128xf32, #tpu.memory_space<vmem>>, %arg8: memref<32x128xf32, #tpu.memory_space<vmem>>, %arg9: memref<1x128xf32, #tpu.memory_space<vmem>>, %arg10: memref<48x128xf32, #tpu.memory_space<vmem>>, %arg11: memref<56x128xf32, #tpu.memory_space<vmem>>, %arg12: memref<56x32xf32, #tpu.memory_space<vmem>>, %arg13: memref<56x32xf32, #tpu.memory_space<vmem>>) attributes {dimension_semantics = [#tpu.dimension_semantics<arbitrary>], iteration_bounds = array<i64: 1>, scalar_prefetch = 0 : i64, scratch_operands = 3 : i64, tpu.core_type = #tpu.core_type<tc>, window_params = [{pipeline_mode = #tpu.pipeline_mode<synchronous>, transform_indices = @transform_0, window_bounds = array<i64: 56, 32>}, {pipeline_mode = #tpu.pipeline_mode<synchronous>, transform_indices = @transform_1, window_bounds = array<i64: 32, 128>}, {pipeline_mode = #tpu.pipeline_mode<synchronous>, transform_indices = @transform_2, window_bounds = array<i64: 32, 128>}, {pipeline_mode = #tpu.pipeline_mode<synchronous>, transform_indices = @transform_3, window_bounds = array<i64: 1, 128>}, {pipeline_mode = #tpu.pipeline_mode<synchronous>, transform_indices = @transform_4, window_bounds = array<i64: 32, 128>}, {pipeline_mode = #tpu.pipeline_mode<synchronous>, transform_indices = @transform_5, window_bounds = array<i64: 32, 128>}, {pipeline_mode = #tpu.pipeline_mode<synchronous>, transform_indices = @transform_6, window_bounds = array<i64: 1, 128>}, {pipeline_mode = #tpu.pipeline_mode<synchronous>, transform_indices = @transform_7, window_bounds = array<i64: 32, 128>}, {pipeline_mode = #tpu.pipeline_mode<synchronous>, transform_indices = @transform_8, window_bounds = array<i64: 1, 128>}, {pipeline_mode = #tpu.pipeline_mode<synchronous>, transform_indices = @transform_9, window_bounds = array<i64: 48, 128>}]} {
    %0 = tpu.iota {dimensions = array<i32: 1>} : vector<8x128xi32>
    %c64_i32 = arith.constant 64 : i32
    %1 = vector.broadcast %c64_i32 : i32 to vector<8x128xi32>
    %2 = arith.cmpi sge, %0, %1 : vector<8x128xi32>
    %c96_i32 = arith.constant 96 : i32
    %3 = vector.broadcast %c96_i32 : i32 to vector<8x128xi32>
    %4 = arith.cmpi slt, %0, %3 : vector<8x128xi32>
    %5 = arith.andi %2, %4 : vector<8x128xi1>
    %c0 = arith.constant 0 : index
    %c0_0 = arith.constant 0 : index
    %6 = vector.load %arg1[%c0, %c0_0] : memref<56x32xf32, #tpu.memory_space<vmem>>, vector<56x32xf32>
    %c0_1 = arith.constant 0 : index
    %c0_2 = arith.constant 0 : index
    %7 = vector.load %arg2[%c0_1, %c0_2] : memref<32x128xf32, #tpu.memory_space<vmem>>, vector<32x128xf32>
    %cst = arith.constant dense<0.000000e+00> : vector<56x128xf32>
    %8 = tpu.matmul %6, %7, %cst {dimension_numbers = #tpu.dot_dimension_numbers<[1], [0], [0], [1], [0, 0, 1, 1], [], []>} : vector<56x32xf32>, vector<32x128xf32>, vector<56x128xf32> -> vector<56x128xf32>
    %c0_3 = arith.constant 0 : index
    %c0_4 = arith.constant 0 : index
    %9 = vector.load %arg4[%c0_3, %c0_4] : memref<1x128xf32, #tpu.memory_space<vmem>>, vector<1x128xf32>
    %10 = vector.broadcast %9 : vector<1x128xf32> to vector<56x128xf32>
    %11 = arith.addf %8, %10 : vector<56x128xf32>
    %c0_5 = arith.constant 0 : index
    %c0_6 = arith.constant 0 : index
    %12 = vector.load %arg11[%c0_5, %c0_6] : memref<56x128xf32, #tpu.memory_space<vmem>>, vector<56x128xf32>
    tpu.vector_store %arg11[%c0_5, %c0_6], %11 {strides = array<i32>} : memref<56x128xf32, #tpu.memory_space<vmem>>, vector<56x128xf32>,
    %c0_7 = arith.constant 0 : index
    %c0_8 = arith.constant 0 : index
    %13 = vector.load %arg3[%c0_7, %c0_8] : memref<32x128xf32, #tpu.memory_space<vmem>>, vector<32x128xf32>
    %cst_9 = arith.constant 0.000000e+00 : f32
    %14 = vector.broadcast %cst_9 : f32 to vector<8x32xf32>
    %cst_10 = arith.constant 0.000000e+00 : f32
    %15 = vector.broadcast %cst_10 : f32 to vector<8x32xf32>
    %c0_11 = arith.constant 0 : index
    %c0_12 = arith.constant 0 : index
    %16 = vector.load %arg11[%c0_11, %c0_12] : memref<56x128xf32, #tpu.memory_space<vmem>>, vector<8x128xf32>
    %cst_13 = arith.constant dense<0.000000e+00> : vector<8x128xf32>
    %17 = tpu.matmul %14, %13, %cst_13 {dimension_numbers = #tpu.dot_dimension_numbers<[1], [0], [0], [1], [0, 0, 1, 1], [], []>} : vector<8x32xf32>, vector<32x128xf32>, vector<8x128xf32> -> vector<8x128xf32>
    %18 = arith.addf %16, %17 : vector<8x128xf32>
    %cst_14 = arith.constant 2.000000e+00 : f32
    %19 = vector.broadcast %cst_14 : f32 to vector<8x128xf32>
    %20 = arith.mulf %19, %18 : vector<8x128xf32>
    %21 = arith.select %5, %20, %18 : vector<8x128xi1>, vector<8x128xf32>
    %22 = arith.negf %21 : vector<8x128xf32>
    %23 = math.exp %22 : vector<8x128xf32>
    %cst_15 = arith.constant 1.000000e+00 : f32
    %24 = vector.broadcast %cst_15 : f32 to vector<8x128xf32>
    %25 = arith.addf %24, %23 : vector<8x128xf32>
    %26 = arith.divf %24, %25 : vector<8x128xf32>
    %cst_16 = arith.constant 2.000000e+00 : f32
    %27 = vector.broadcast %cst_16 : f32 to vector<8x128xf32>
    %28 = arith.mulf %27, %26 : vector<8x128xf32>
    %cst_17 = arith.constant 1.000000e+00 : f32
    %29 = vector.broadcast %cst_17 : f32 to vector<8x128xf32>
    %30 = arith.subf %28, %29 : vector<8x128xf32>
    %31 = arith.select %5, %30, %26 : vector<8x128xi1>, vector<8x128xf32>
    %32 = vector.extract_strided_slice %31 {offsets = [0, 0], sizes = [8, 32], strides = [1, 1]} : vector<8x128xf32> to vector<8x32xf32>
    %33 = vector.extract_strided_slice %31 {offsets = [0, 32], sizes = [8, 32], strides = [1, 1]} : vector<8x128xf32> to vector<8x32xf32>
    %34 = vector.extract_strided_slice %31 {offsets = [0, 64], sizes = [8, 32], strides = [1, 1]} : vector<8x128xf32> to vector<8x32xf32>
    %35 = vector.extract_strided_slice %31 {offsets = [0, 96], sizes = [8, 32], strides = [1, 1]} : vector<8x128xf32> to vector<8x32xf32>
    %36 = arith.mulf %33, %15 : vector<8x32xf32>
    %37 = arith.mulf %32, %34 : vector<8x32xf32>
    %38 = arith.addf %36, %37 : vector<8x32xf32>
    %39 = math.tanh %38 : vector<8x32xf32>
    %40 = arith.mulf %35, %39 : vector<8x32xf32>
    %c0_18 = arith.constant 0 : index
    %c0_19 = arith.constant 0 : index
    %41 = vector.load %arg12[%c0_18, %c0_19] : memref<56x32xf32, #tpu.memory_space<vmem>>, vector<8x32xf32>
    tpu.vector_store %arg12[%c0_18, %c0_19], %40 {strides = array<i32>} : memref<56x32xf32, #tpu.memory_space<vmem>>, vector<8x32xf32>,
    %c8 = arith.constant 8 : index
    %c0_20 = arith.constant 0 : index
    %42 = vector.load %arg11[%c8, %c0_20] : memref<56x128xf32, #tpu.memory_space<vmem>>, vector<8x128xf32>
    %cst_21 = arith.constant dense<0.000000e+00> : vector<8x128xf32>
    %43 = tpu.matmul %40, %13, %cst_21 {dimension_numbers = #tpu.dot_dimension_numbers<[1], [0], [0], [1], [0, 0, 1, 1], [], []>} : vector<8x32xf32>, vector<32x128xf32>, vector<8x128xf32> -> vector<8x128xf32>
    %44 = arith.addf %42, %43 : vector<8x128xf32>
    %cst_22 = arith.constant 2.000000e+00 : f32
    %45 = vector.broadcast %cst_22 : f32 to vector<8x128xf32>
    %46 = arith.mulf %45, %44 : vector<8x128xf32>
    %47 = arith.select %5, %46, %44 : vector<8x128xi1>, vector<8x128xf32>
    %48 = arith.negf %47 : vector<8x128xf32>
    %49 = math.exp %48 : vector<8x128xf32>
    %cst_23 = arith.constant 1.000000e+00 : f32
    %50 = vector.broadcast %cst_23 : f32 to vector<8x128xf32>
    %51 = arith.addf %50, %49 : vector<8x128xf32>
    %52 = arith.divf %50, %51 : vector<8x128xf32>
    %cst_24 = arith.constant 2.000000e+00 : f32
    %53 = vector.broadcast %cst_24 : f32 to vector<8x128xf32>
    %54 = arith.mulf %53, %52 : vector<8x128xf32>
    %cst_25 = arith.constant 1.000000e+00 : f32
    %55 = vector.broadcast %cst_25 : f32 to vector<8x128xf32>
    %56 = arith.subf %54, %55 : vector<8x128xf32>
    %57 = arith.select %5, %56, %52 : vector<8x128xi1>, vector<8x128xf32>
    %58 = vector.extract_strided_slice %57 {offsets = [0, 0], sizes = [8, 32], strides = [1, 1]} : vector<8x128xf32> to vector<8x32xf32>
    %59 = vector.extract_strided_slice %57 {offsets = [0, 32], sizes = [8, 32], strides = [1, 1]} : vector<8x128xf32> to vector<8x32xf32>
    %60 = vector.extract_strided_slice %57 {offsets = [0, 64], sizes = [8, 32], strides = [1, 1]} : vector<8x128xf32> to vector<8x32xf32>
    %61 = vector.extract_strided_slice %57 {offsets = [0, 96], sizes = [8, 32], strides = [1, 1]} : vector<8x128xf32> to vector<8x32xf32>
    %62 = arith.mulf %59, %38 : vector<8x32xf32>
    %63 = arith.mulf %58, %60 : vector<8x32xf32>
    %64 = arith.addf %62, %63 : vector<8x32xf32>
    %65 = math.tanh %64 : vector<8x32xf32>
    %66 = arith.mulf %61, %65 : vector<8x32xf32>
    %c8_26 = arith.constant 8 : index
    %c0_27 = arith.constant 0 : index
    %67 = vector.load %arg12[%c8_26, %c0_27] : memref<56x32xf32, #tpu.memory_space<vmem>>, vector<8x32xf32>
    tpu.vector_store %arg12[%c8_26, %c0_27], %66 {strides = array<i32>} : memref<56x32xf32, #tpu.memory_space<vmem>>, vector<8x32xf32>,
    %c16 = arith.constant 16 : index
    %c0_28 = arith.constant 0 : index
    %68 = vector.load %arg11[%c16, %c0_28] : memref<56x128xf32, #tpu.memory_space<vmem>>, vector<8x128xf32>
    %cst_29 = arith.constant dense<0.000000e+00> : vector<8x128xf32>
    %69 = tpu.matmul %66, %13, %cst_29 {dimension_numbers = #tpu.dot_dimension_numbers<[1], [0], [0], [1], [0, 0, 1, 1], [], []>} : vector<8x32xf32>, vector<32x128xf32>, vector<8x128xf32> -> vector<8x128xf32>
    %70 = arith.addf %68, %69 : vector<8x128xf32>
    %cst_30 = arith.constant 2.000000e+00 : f32
    %71 = vector.broadcast %cst_30 : f32 to vector<8x128xf32>
    %72 = arith.mulf %71, %70 : vector<8x128xf32>
    %73 = arith.select %5, %72, %70 : vector<8x128xi1>, vector<8x128xf32>
    %74 = arith.negf %73 : vector<8x128xf32>
    %75 = math.exp %74 : vector<8x128xf32>
    %cst_31 = arith.constant 1.000000e+00 : f32
    %76 = vector.broadcast %cst_31 : f32 to vector<8x128xf32>
    %77 = arith.addf %76, %75 : vector<8x128xf32>
    %78 = arith.divf %76, %77 : vector<8x128xf32>
    %cst_32 = arith.constant 2.000000e+00 : f32
    %79 = vector.broadcast %cst_32 : f32 to vector<8x128xf32>
    %80 = arith.mulf %79, %78 : vector<8x128xf32>
    %cst_33 = arith.constant 1.000000e+00 : f32
    %81 = vector.broadcast %cst_33 : f32 to vector<8x128xf32>
    %82 = arith.subf %80, %81 : vector<8x128xf32>
    %83 = arith.select %5, %82, %78 : vector<8x128xi1>, vector<8x128xf32>
    %84 = vector.extract_strided_slice %83 {offsets = [0, 0], sizes = [8, 32], strides = [1, 1]} : vector<8x128xf32> to vector<8x32xf32>
    %85 = vector.extract_strided_slice %83 {offsets = [0, 32], sizes = [8, 32], strides = [1, 1]} : vector<8x128xf32> to vector<8x32xf32>
    %86 = vector.extract_strided_slice %83 {offsets = [0, 64], sizes = [8, 32], strides = [1, 1]} : vector<8x128xf32> to vector<8x32xf32>
    %87 = vector.extract_strided_slice %83 {offsets = [0, 96], sizes = [8, 32], strides = [1, 1]} : vector<8x128xf32> to vector<8x32xf32>
    %88 = arith.mulf %85, %64 : vector<8x32xf32>
    %89 = arith.mulf %84, %86 : vector<8x32xf32>
    %90 = arith.addf %88, %89 : vector<8x32xf32>
    %91 = math.tanh %90 : vector<8x32xf32>
    %92 = arith.mulf %87, %91 : vector<8x32xf32>
    %c16_34 = arith.constant 16 : index
    %c0_35 = arith.constant 0 : index
    %93 = vector.load %arg12[%c16_34, %c0_35] : memref<56x32xf32, #tpu.memory_space<vmem>>, vector<8x32xf32>
    tpu.vector_store %arg12[%c16_34, %c0_35], %92 {strides = array<i32>} : memref<56x32xf32, #tpu.memory_space<vmem>>, vector<8x32xf32>,
    %c24 = arith.constant 24 : index
    %c0_36 = arith.constant 0 : index
    %94 = vector.load %arg11[%c24, %c0_36] : memref<56x128xf32, #tpu.memory_space<vmem>>, vector<8x128xf32>
    %cst_37 = arith.constant dense<0.000000e+00> : vector<8x128xf32>
    %95 = tpu.matmul %92, %13, %cst_37 {dimension_numbers = #tpu.dot_dimension_numbers<[1], [0], [0], [1], [0, 0, 1, 1], [], []>} : vector<8x32xf32>, vector<32x128xf32>, vector<8x128xf32> -> vector<8x128xf32>
    %96 = arith.addf %94, %95 : vector<8x128xf32>
    %cst_38 = arith.constant 2.000000e+00 : f32
    %97 = vector.broadcast %cst_38 : f32 to vector<8x128xf32>
    %98 = arith.mulf %97, %96 : vector<8x128xf32>
    %99 = arith.select %5, %98, %96 : vector<8x128xi1>, vector<8x128xf32>
    %100 = arith.negf %99 : vector<8x128xf32>
    %101 = math.exp %100 : vector<8x128xf32>
    %cst_39 = arith.constant 1.000000e+00 : f32
    %102 = vector.broadcast %cst_39 : f32 to vector<8x128xf32>
    %103 = arith.addf %102, %101 : vector<8x128xf32>
    %104 = arith.divf %102, %103 : vector<8x128xf32>
    %cst_40 = arith.constant 2.000000e+00 : f32
    %105 = vector.broadcast %cst_40 : f32 to vector<8x128xf32>
    %106 = arith.mulf %105, %104 : vector<8x128xf32>
    %cst_41 = arith.constant 1.000000e+00 : f32
    %107 = vector.broadcast %cst_41 : f32 to vector<8x128xf32>
    %108 = arith.subf %106, %107 : vector<8x128xf32>
    %109 = arith.select %5, %108, %104 : vector<8x128xi1>, vector<8x128xf32>
    %110 = vector.extract_strided_slice %109 {offsets = [0, 0], sizes = [8, 32], strides = [1, 1]} : vector<8x128xf32> to vector<8x32xf32>
    %111 = vector.extract_strided_slice %109 {offsets = [0, 32], sizes = [8, 32], strides = [1, 1]} : vector<8x128xf32> to vector<8x32xf32>
    %112 = vector.extract_strided_slice %109 {offsets = [0, 64], sizes = [8, 32], strides = [1, 1]} : vector<8x128xf32> to vector<8x32xf32>
    %113 = vector.extract_strided_slice %109 {offsets = [0, 96], sizes = [8, 32], strides = [1, 1]} : vector<8x128xf32> to vector<8x32xf32>
    %114 = arith.mulf %111, %90 : vector<8x32xf32>
    %115 = arith.mulf %110, %112 : vector<8x32xf32>
    %116 = arith.addf %114, %115 : vector<8x32xf32>
    %117 = math.tanh %116 : vector<8x32xf32>
    %118 = arith.mulf %113, %117 : vector<8x32xf32>
    %c24_42 = arith.constant 24 : index
    %c0_43 = arith.constant 0 : index
    %119 = vector.load %arg12[%c24_42, %c0_43] : memref<56x32xf32, #tpu.memory_space<vmem>>, vector<8x32xf32>
    tpu.vector_store %arg12[%c24_42, %c0_43], %118 {strides = array<i32>} : memref<56x32xf32, #tpu.memory_space<vmem>>, vector<8x32xf32>,
    %c32 = arith.constant 32 : index
    %c0_44 = arith.constant 0 : index
    %120 = vector.load %arg11[%c32, %c0_44] : memref<56x128xf32, #tpu.memory_space<vmem>>, vector<8x128xf32>
    %cst_45 = arith.constant dense<0.000000e+00> : vector<8x128xf32>
    %121 = tpu.matmul %118, %13, %cst_45 {dimension_numbers = #tpu.dot_dimension_numbers<[1], [0], [0], [1], [0, 0, 1, 1], [], []>} : vector<8x32xf32>, vector<32x128xf32>, vector<8x128xf32> -> vector<8x128xf32>
    %122 = arith.addf %120, %121 : vector<8x128xf32>
    %cst_46 = arith.constant 2.000000e+00 : f32
    %123 = vector.broadcast %cst_46 : f32 to vector<8x128xf32>
    %124 = arith.mulf %123, %122 : vector<8x128xf32>
    %125 = arith.select %5, %124, %122 : vector<8x128xi1>, vector<8x128xf32>
    %126 = arith.negf %125 : vector<8x128xf32>
    %127 = math.exp %126 : vector<8x128xf32>
    %cst_47 = arith.constant 1.000000e+00 : f32
    %128 = vector.broadcast %cst_47 : f32 to vector<8x128xf32>
    %129 = arith.addf %128, %127 : vector<8x128xf32>
    %130 = arith.divf %128, %129 : vector<8x128xf32>
    %cst_48 = arith.constant 2.000000e+00 : f32
    %131 = vector.broadcast %cst_48 : f32 to vector<8x128xf32>
    %132 = arith.mulf %131, %130 : vector<8x128xf32>
    %cst_49 = arith.constant 1.000000e+00 : f32
    %133 = vector.broadcast %cst_49 : f32 to vector<8x128xf32>
    %134 = arith.subf %132, %133 : vector<8x128xf32>
    %135 = arith.select %5, %134, %130 : vector<8x128xi1>, vector<8x128xf32>
    %136 = vector.extract_strided_slice %135 {offsets = [0, 0], sizes = [8, 32], strides = [1, 1]} : vector<8x128xf32> to vector<8x32xf32>
    %137 = vector.extract_strided_slice %135 {offsets = [0, 32], sizes = [8, 32], strides = [1, 1]} : vector<8x128xf32> to vector<8x32xf32>
    %138 = vector.extract_strided_slice %135 {offsets = [0, 64], sizes = [8, 32], strides = [1, 1]} : vector<8x128xf32> to vector<8x32xf32>
    %139 = vector.extract_strided_slice %135 {offsets = [0, 96], sizes = [8, 32], strides = [1, 1]} : vector<8x128xf32> to vector<8x32xf32>
    %140 = arith.mulf %137, %116 : vector<8x32xf32>
    %141 = arith.mulf %136, %138 : vector<8x32xf32>
    %142 = arith.addf %140, %141 : vector<8x32xf32>
    %143 = math.tanh %142 : vector<8x32xf32>
    %144 = arith.mulf %139, %143 : vector<8x32xf32>
    %c32_50 = arith.constant 32 : index
    %c0_51 = arith.constant 0 : index
    %145 = vector.load %arg12[%c32_50, %c0_51] : memref<56x32xf32, #tpu.memory_space<vmem>>, vector<8x32xf32>
    tpu.vector_store %arg12[%c32_50, %c0_51], %144 {strides = array<i32>} : memref<56x32xf32, #tpu.memory_space<vmem>>, vector<8x32xf32>,
    %c40 = arith.constant 40 : index
    %c0_52 = arith.constant 0 : index
    %146 = vector.load %arg11[%c40, %c0_52] : memref<56x128xf32, #tpu.memory_space<vmem>>, vector<8x128xf32>
    %cst_53 = arith.constant dense<0.000000e+00> : vector<8x128xf32>
    %147 = tpu.matmul %144, %13, %cst_53 {dimension_numbers = #tpu.dot_dimension_numbers<[1], [0], [0], [1], [0, 0, 1, 1], [], []>} : vector<8x32xf32>, vector<32x128xf32>, vector<8x128xf32> -> vector<8x128xf32>
    %148 = arith.addf %146, %147 : vector<8x128xf32>
    %cst_54 = arith.constant 2.000000e+00 : f32
    %149 = vector.broadcast %cst_54 : f32 to vector<8x128xf32>
    %150 = arith.mulf %149, %148 : vector<8x128xf32>
    %151 = arith.select %5, %150, %148 : vector<8x128xi1>, vector<8x128xf32>
    %152 = arith.negf %151 : vector<8x128xf32>
    %153 = math.exp %152 : vector<8x128xf32>
    %cst_55 = arith.constant 1.000000e+00 : f32
    %154 = vector.broadcast %cst_55 : f32 to vector<8x128xf32>
    %155 = arith.addf %154, %153 : vector<8x128xf32>
    %156 = arith.divf %154, %155 : vector<8x128xf32>
    %cst_56 = arith.constant 2.000000e+00 : f32
    %157 = vector.broadcast %cst_56 : f32 to vector<8x128xf32>
    %158 = arith.mulf %157, %156 : vector<8x128xf32>
    %cst_57 = arith.constant 1.000000e+00 : f32
    %159 = vector.broadcast %cst_57 : f32 to vector<8x128xf32>
    %160 = arith.subf %158, %159 : vector<8x128xf32>
    %161 = arith.select %5, %160, %156 : vector<8x128xi1>, vector<8x128xf32>
    %162 = vector.extract_strided_slice %161 {offsets = [0, 0], sizes = [8, 32], strides = [1, 1]} : vector<8x128xf32> to vector<8x32xf32>
    %163 = vector.extract_strided_slice %161 {offsets = [0, 32], sizes = [8, 32], strides = [1, 1]} : vector<8x128xf32> to vector<8x32xf32>
    %164 = vector.extract_strided_slice %161 {offsets = [0, 64], sizes = [8, 32], strides = [1, 1]} : vector<8x128xf32> to vector<8x32xf32>
    %165 = vector.extract_strided_slice %161 {offsets = [0, 96], sizes = [8, 32], strides = [1, 1]} : vector<8x128xf32> to vector<8x32xf32>
    %166 = arith.mulf %163, %142 : vector<8x32xf32>
    %167 = arith.mulf %162, %164 : vector<8x32xf32>
    %168 = arith.addf %166, %167 : vector<8x32xf32>
    %169 = math.tanh %168 : vector<8x32xf32>
    %170 = arith.mulf %165, %169 : vector<8x32xf32>
    %c40_58 = arith.constant 40 : index
    %c0_59 = arith.constant 0 : index
    %171 = vector.load %arg12[%c40_58, %c0_59] : memref<56x32xf32, #tpu.memory_space<vmem>>, vector<8x32xf32>
    tpu.vector_store %arg12[%c40_58, %c0_59], %170 {strides = array<i32>} : memref<56x32xf32, #tpu.memory_space<vmem>>, vector<8x32xf32>,
    %c48 = arith.constant 48 : index
    %c0_60 = arith.constant 0 : index
    %172 = vector.load %arg11[%c48, %c0_60] : memref<56x128xf32, #tpu.memory_space<vmem>>, vector<8x128xf32>
    %cst_61 = arith.constant dense<0.000000e+00> : vector<8x128xf32>
    %173 = tpu.matmul %170, %13, %cst_61 {dimension_numbers = #tpu.dot_dimension_numbers<[1], [0], [0], [1], [0, 0, 1, 1], [], []>} : vector<8x32xf32>, vector<32x128xf32>, vector<8x128xf32> -> vector<8x128xf32>
    %174 = arith.addf %172, %173 : vector<8x128xf32>
    %cst_62 = arith.constant 2.000000e+00 : f32
    %175 = vector.broadcast %cst_62 : f32 to vector<8x128xf32>
    %176 = arith.mulf %175, %174 : vector<8x128xf32>
    %177 = arith.select %5, %176, %174 : vector<8x128xi1>, vector<8x128xf32>
    %178 = arith.negf %177 : vector<8x128xf32>
    %179 = math.exp %178 : vector<8x128xf32>
    %cst_63 = arith.constant 1.000000e+00 : f32
    %180 = vector.broadcast %cst_63 : f32 to vector<8x128xf32>
    %181 = arith.addf %180, %179 : vector<8x128xf32>
    %182 = arith.divf %180, %181 : vector<8x128xf32>
    %cst_64 = arith.constant 2.000000e+00 : f32
    %183 = vector.broadcast %cst_64 : f32 to vector<8x128xf32>
    %184 = arith.mulf %183, %182 : vector<8x128xf32>
    %cst_65 = arith.constant 1.000000e+00 : f32
    %185 = vector.broadcast %cst_65 : f32 to vector<8x128xf32>
    %186 = arith.subf %184, %185 : vector<8x128xf32>
    %187 = arith.select %5, %186, %182 : vector<8x128xi1>, vector<8x128xf32>
    %188 = vector.extract_strided_slice %187 {offsets = [0, 0], sizes = [8, 32], strides = [1, 1]} : vector<8x128xf32> to vector<8x32xf32>
    %189 = vector.extract_strided_slice %187 {offsets = [0, 32], sizes = [8, 32], strides = [1, 1]} : vector<8x128xf32> to vector<8x32xf32>
    %190 = vector.extract_strided_slice %187 {offsets = [0, 64], sizes = [8, 32], strides = [1, 1]} : vector<8x128xf32> to vector<8x32xf32>
    %191 = vector.extract_strided_slice %187 {offsets = [0, 96], sizes = [8, 32], strides = [1, 1]} : vector<8x128xf32> to vector<8x32xf32>
    %192 = arith.mulf %189, %168 : vector<8x32xf32>
    %193 = arith.mulf %188, %190 : vector<8x32xf32>
    %194 = arith.addf %192, %193 : vector<8x32xf32>
    %195 = math.tanh %194 : vector<8x32xf32>
    %196 = arith.mulf %191, %195 : vector<8x32xf32>
    %c48_66 = arith.constant 48 : index
    %c0_67 = arith.constant 0 : index
    %197 = vector.load %arg12[%c48_66, %c0_67] : memref<56x32xf32, #tpu.memory_space<vmem>>, vector<8x32xf32>
    tpu.vector_store %arg12[%c48_66, %c0_67], %196 {strides = array<i32>} : memref<56x32xf32, #tpu.memory_space<vmem>>, vector<8x32xf32>,
    %c0_68 = arith.constant 0 : index
    %c0_69 = arith.constant 0 : index
    %198 = vector.load %arg12[%c0_68, %c0_69] : memref<56x32xf32, #tpu.memory_space<vmem>>, vector<56x32xf32>
    %c0_70 = arith.constant 0 : index
    %c0_71 = arith.constant 0 : index
    %199 = vector.load %arg5[%c0_70, %c0_71] : memref<32x128xf32, #tpu.memory_space<vmem>>, vector<32x128xf32>
    %cst_72 = arith.constant dense<0.000000e+00> : vector<56x128xf32>
    %200 = tpu.matmul %198, %199, %cst_72 {dimension_numbers = #tpu.dot_dimension_numbers<[1], [0], [0], [1], [0, 0, 1, 1], [], []>} : vector<56x32xf32>, vector<32x128xf32>, vector<56x128xf32> -> vector<56x128xf32>
    %c0_73 = arith.constant 0 : index
    %c0_74 = arith.constant 0 : index
    %201 = vector.load %arg7[%c0_73, %c0_74] : memref<1x128xf32, #tpu.memory_space<vmem>>, vector<1x128xf32>
    %202 = vector.broadcast %201 : vector<1x128xf32> to vector<56x128xf32>
    %203 = arith.addf %200, %202 : vector<56x128xf32>
    %c0_75 = arith.constant 0 : index
    %c0_76 = arith.constant 0 : index
    %204 = vector.load %arg11[%c0_75, %c0_76] : memref<56x128xf32, #tpu.memory_space<vmem>>, vector<56x128xf32>
    tpu.vector_store %arg11[%c0_75, %c0_76], %203 {strides = array<i32>} : memref<56x128xf32, #tpu.memory_space<vmem>>, vector<56x128xf32>,
    %c0_77 = arith.constant 0 : index
    %c0_78 = arith.constant 0 : index
    %205 = vector.load %arg6[%c0_77, %c0_78] : memref<32x128xf32, #tpu.memory_space<vmem>>, vector<32x128xf32>
    %cst_79 = arith.constant 0.000000e+00 : f32
    %206 = vector.broadcast %cst_79 : f32 to vector<8x32xf32>
    %cst_80 = arith.constant 0.000000e+00 : f32
    %207 = vector.broadcast %cst_80 : f32 to vector<8x32xf32>
    %c0_81 = arith.constant 0 : index
    %c0_82 = arith.constant 0 : index
    %208 = vector.load %arg11[%c0_81, %c0_82] : memref<56x128xf32, #tpu.memory_space<vmem>>, vector<8x128xf32>
    %cst_83 = arith.constant dense<0.000000e+00> : vector<8x128xf32>
    %209 = tpu.matmul %206, %205, %cst_83 {dimension_numbers = #tpu.dot_dimension_numbers<[1], [0], [0], [1], [0, 0, 1, 1], [], []>} : vector<8x32xf32>, vector<32x128xf32>, vector<8x128xf32> -> vector<8x128xf32>
    %210 = arith.addf %208, %209 : vector<8x128xf32>
    %cst_84 = arith.constant 2.000000e+00 : f32
    %211 = vector.broadcast %cst_84 : f32 to vector<8x128xf32>
    %212 = arith.mulf %211, %210 : vector<8x128xf32>
    %213 = arith.select %5, %212, %210 : vector<8x128xi1>, vector<8x128xf32>
    %214 = arith.negf %213 : vector<8x128xf32>
    %215 = math.exp %214 : vector<8x128xf32>
    %cst_85 = arith.constant 1.000000e+00 : f32
    %216 = vector.broadcast %cst_85 : f32 to vector<8x128xf32>
    %217 = arith.addf %216, %215 : vector<8x128xf32>
    %218 = arith.divf %216, %217 : vector<8x128xf32>
    %cst_86 = arith.constant 2.000000e+00 : f32
    %219 = vector.broadcast %cst_86 : f32 to vector<8x128xf32>
    %220 = arith.mulf %219, %218 : vector<8x128xf32>
    %cst_87 = arith.constant 1.000000e+00 : f32
    %221 = vector.broadcast %cst_87 : f32 to vector<8x128xf32>
    %222 = arith.subf %220, %221 : vector<8x128xf32>
    %223 = arith.select %5, %222, %218 : vector<8x128xi1>, vector<8x128xf32>
    %224 = vector.extract_strided_slice %223 {offsets = [0, 0], sizes = [8, 32], strides = [1, 1]} : vector<8x128xf32> to vector<8x32xf32>
    %225 = vector.extract_strided_slice %223 {offsets = [0, 32], sizes = [8, 32], strides = [1, 1]} : vector<8x128xf32> to vector<8x32xf32>
    %226 = vector.extract_strided_slice %223 {offsets = [0, 64], sizes = [8, 32], strides = [1, 1]} : vector<8x128xf32> to vector<8x32xf32>
    %227 = vector.extract_strided_slice %223 {offsets = [0, 96], sizes = [8, 32], strides = [1, 1]} : vector<8x128xf32> to vector<8x32xf32>
    %228 = arith.mulf %225, %207 : vector<8x32xf32>
    %229 = arith.mulf %224, %226 : vector<8x32xf32>
    %230 = arith.addf %228, %229 : vector<8x32xf32>
    %231 = math.tanh %230 : vector<8x32xf32>
    %232 = arith.mulf %227, %231 : vector<8x32xf32>
    %c8_88 = arith.constant 8 : index
    %c0_89 = arith.constant 0 : index
    %233 = vector.load %arg11[%c8_88, %c0_89] : memref<56x128xf32, #tpu.memory_space<vmem>>, vector<8x128xf32>
    %cst_90 = arith.constant dense<0.000000e+00> : vector<8x128xf32>
    %234 = tpu.matmul %232, %205, %cst_90 {dimension_numbers = #tpu.dot_dimension_numbers<[1], [0], [0], [1], [0, 0, 1, 1], [], []>} : vector<8x32xf32>, vector<32x128xf32>, vector<8x128xf32> -> vector<8x128xf32>
    %235 = arith.addf %233, %234 : vector<8x128xf32>
    %cst_91 = arith.constant 2.000000e+00 : f32
    %236 = vector.broadcast %cst_91 : f32 to vector<8x128xf32>
    %237 = arith.mulf %236, %235 : vector<8x128xf32>
    %238 = arith.select %5, %237, %235 : vector<8x128xi1>, vector<8x128xf32>
    %239 = arith.negf %238 : vector<8x128xf32>
    %240 = math.exp %239 : vector<8x128xf32>
    %cst_92 = arith.constant 1.000000e+00 : f32
    %241 = vector.broadcast %cst_92 : f32 to vector<8x128xf32>
    %242 = arith.addf %241, %240 : vector<8x128xf32>
    %243 = arith.divf %241, %242 : vector<8x128xf32>
    %cst_93 = arith.constant 2.000000e+00 : f32
    %244 = vector.broadcast %cst_93 : f32 to vector<8x128xf32>
    %245 = arith.mulf %244, %243 : vector<8x128xf32>
    %cst_94 = arith.constant 1.000000e+00 : f32
    %246 = vector.broadcast %cst_94 : f32 to vector<8x128xf32>
    %247 = arith.subf %245, %246 : vector<8x128xf32>
    %248 = arith.select %5, %247, %243 : vector<8x128xi1>, vector<8x128xf32>
    %249 = vector.extract_strided_slice %248 {offsets = [0, 0], sizes = [8, 32], strides = [1, 1]} : vector<8x128xf32> to vector<8x32xf32>
    %250 = vector.extract_strided_slice %248 {offsets = [0, 32], sizes = [8, 32], strides = [1, 1]} : vector<8x128xf32> to vector<8x32xf32>
    %251 = vector.extract_strided_slice %248 {offsets = [0, 64], sizes = [8, 32], strides = [1, 1]} : vector<8x128xf32> to vector<8x32xf32>
    %252 = vector.extract_strided_slice %248 {offsets = [0, 96], sizes = [8, 32], strides = [1, 1]} : vector<8x128xf32> to vector<8x32xf32>
    %253 = arith.mulf %250, %230 : vector<8x32xf32>
    %254 = arith.mulf %249, %251 : vector<8x32xf32>
    %255 = arith.addf %253, %254 : vector<8x32xf32>
    %256 = math.tanh %255 : vector<8x32xf32>
    %257 = arith.mulf %252, %256 : vector<8x32xf32>
    %c8_95 = arith.constant 8 : index
    %c0_96 = arith.constant 0 : index
    %258 = vector.load %arg13[%c8_95, %c0_96] : memref<56x32xf32, #tpu.memory_space<vmem>>, vector<8x32xf32>
    tpu.vector_store %arg13[%c8_95, %c0_96], %257 {strides = array<i32>} : memref<56x32xf32, #tpu.memory_space<vmem>>, vector<8x32xf32>,
    %c16_97 = arith.constant 16 : index
    %c0_98 = arith.constant 0 : index
    %259 = vector.load %arg11[%c16_97, %c0_98] : memref<56x128xf32, #tpu.memory_space<vmem>>, vector<8x128xf32>
    %cst_99 = arith.constant dense<0.000000e+00> : vector<8x128xf32>
    %260 = tpu.matmul %257, %205, %cst_99 {dimension_numbers = #tpu.dot_dimension_numbers<[1], [0], [0], [1], [0, 0, 1, 1], [], []>} : vector<8x32xf32>, vector<32x128xf32>, vector<8x128xf32> -> vector<8x128xf32>
    %261 = arith.addf %259, %260 : vector<8x128xf32>
    %cst_100 = arith.constant 2.000000e+00 : f32
    %262 = vector.broadcast %cst_100 : f32 to vector<8x128xf32>
    %263 = arith.mulf %262, %261 : vector<8x128xf32>
    %264 = arith.select %5, %263, %261 : vector<8x128xi1>, vector<8x128xf32>
    %265 = arith.negf %264 : vector<8x128xf32>
    %266 = math.exp %265 : vector<8x128xf32>
    %cst_101 = arith.constant 1.000000e+00 : f32
    %267 = vector.broadcast %cst_101 : f32 to vector<8x128xf32>
    %268 = arith.addf %267, %266 : vector<8x128xf32>
    %269 = arith.divf %267, %268 : vector<8x128xf32>
    %cst_102 = arith.constant 2.000000e+00 : f32
    %270 = vector.broadcast %cst_102 : f32 to vector<8x128xf32>
    %271 = arith.mulf %270, %269 : vector<8x128xf32>
    %cst_103 = arith.constant 1.000000e+00 : f32
    %272 = vector.broadcast %cst_103 : f32 to vector<8x128xf32>
    %273 = arith.subf %271, %272 : vector<8x128xf32>
    %274 = arith.select %5, %273, %269 : vector<8x128xi1>, vector<8x128xf32>
    %275 = vector.extract_strided_slice %274 {offsets = [0, 0], sizes = [8, 32], strides = [1, 1]} : vector<8x128xf32> to vector<8x32xf32>
    %276 = vector.extract_strided_slice %274 {offsets = [0, 32], sizes = [8, 32], strides = [1, 1]} : vector<8x128xf32> to vector<8x32xf32>
    %277 = vector.extract_strided_slice %274 {offsets = [0, 64], sizes = [8, 32], strides = [1, 1]} : vector<8x128xf32> to vector<8x32xf32>
    %278 = vector.extract_strided_slice %274 {offsets = [0, 96], sizes = [8, 32], strides = [1, 1]} : vector<8x128xf32> to vector<8x32xf32>
    %279 = arith.mulf %276, %255 : vector<8x32xf32>
    %280 = arith.mulf %275, %277 : vector<8x32xf32>
    %281 = arith.addf %279, %280 : vector<8x32xf32>
    %282 = math.tanh %281 : vector<8x32xf32>
    %283 = arith.mulf %278, %282 : vector<8x32xf32>
    %c16_104 = arith.constant 16 : index
    %c0_105 = arith.constant 0 : index
    %284 = vector.load %arg13[%c16_104, %c0_105] : memref<56x32xf32, #tpu.memory_space<vmem>>, vector<8x32xf32>
    tpu.vector_store %arg13[%c16_104, %c0_105], %283 {strides = array<i32>} : memref<56x32xf32, #tpu.memory_space<vmem>>, vector<8x32xf32>,
    %c24_106 = arith.constant 24 : index
    %c0_107 = arith.constant 0 : index
    %285 = vector.load %arg11[%c24_106, %c0_107] : memref<56x128xf32, #tpu.memory_space<vmem>>, vector<8x128xf32>
    %cst_108 = arith.constant dense<0.000000e+00> : vector<8x128xf32>
    %286 = tpu.matmul %283, %205, %cst_108 {dimension_numbers = #tpu.dot_dimension_numbers<[1], [0], [0], [1], [0, 0, 1, 1], [], []>} : vector<8x32xf32>, vector<32x128xf32>, vector<8x128xf32> -> vector<8x128xf32>
    %287 = arith.addf %285, %286 : vector<8x128xf32>
    %cst_109 = arith.constant 2.000000e+00 : f32
    %288 = vector.broadcast %cst_109 : f32 to vector<8x128xf32>
    %289 = arith.mulf %288, %287 : vector<8x128xf32>
    %290 = arith.select %5, %289, %287 : vector<8x128xi1>, vector<8x128xf32>
    %291 = arith.negf %290 : vector<8x128xf32>
    %292 = math.exp %291 : vector<8x128xf32>
    %cst_110 = arith.constant 1.000000e+00 : f32
    %293 = vector.broadcast %cst_110 : f32 to vector<8x128xf32>
    %294 = arith.addf %293, %292 : vector<8x128xf32>
    %295 = arith.divf %293, %294 : vector<8x128xf32>
    %cst_111 = arith.constant 2.000000e+00 : f32
    %296 = vector.broadcast %cst_111 : f32 to vector<8x128xf32>
    %297 = arith.mulf %296, %295 : vector<8x128xf32>
    %cst_112 = arith.constant 1.000000e+00 : f32
    %298 = vector.broadcast %cst_112 : f32 to vector<8x128xf32>
    %299 = arith.subf %297, %298 : vector<8x128xf32>
    %300 = arith.select %5, %299, %295 : vector<8x128xi1>, vector<8x128xf32>
    %301 = vector.extract_strided_slice %300 {offsets = [0, 0], sizes = [8, 32], strides = [1, 1]} : vector<8x128xf32> to vector<8x32xf32>
    %302 = vector.extract_strided_slice %300 {offsets = [0, 32], sizes = [8, 32], strides = [1, 1]} : vector<8x128xf32> to vector<8x32xf32>
    %303 = vector.extract_strided_slice %300 {offsets = [0, 64], sizes = [8, 32], strides = [1, 1]} : vector<8x128xf32> to vector<8x32xf32>
    %304 = vector.extract_strided_slice %300 {offsets = [0, 96], sizes = [8, 32], strides = [1, 1]} : vector<8x128xf32> to vector<8x32xf32>
    %305 = arith.mulf %302, %281 : vector<8x32xf32>
    %306 = arith.mulf %301, %303 : vector<8x32xf32>
    %307 = arith.addf %305, %306 : vector<8x32xf32>
    %308 = math.tanh %307 : vector<8x32xf32>
    %309 = arith.mulf %304, %308 : vector<8x32xf32>
    %c24_113 = arith.constant 24 : index
    %c0_114 = arith.constant 0 : index
    %310 = vector.load %arg13[%c24_113, %c0_114] : memref<56x32xf32, #tpu.memory_space<vmem>>, vector<8x32xf32>
    tpu.vector_store %arg13[%c24_113, %c0_114], %309 {strides = array<i32>} : memref<56x32xf32, #tpu.memory_space<vmem>>, vector<8x32xf32>,
    %c32_115 = arith.constant 32 : index
    %c0_116 = arith.constant 0 : index
    %311 = vector.load %arg11[%c32_115, %c0_116] : memref<56x128xf32, #tpu.memory_space<vmem>>, vector<8x128xf32>
    %cst_117 = arith.constant dense<0.000000e+00> : vector<8x128xf32>
    %312 = tpu.matmul %309, %205, %cst_117 {dimension_numbers = #tpu.dot_dimension_numbers<[1], [0], [0], [1], [0, 0, 1, 1], [], []>} : vector<8x32xf32>, vector<32x128xf32>, vector<8x128xf32> -> vector<8x128xf32>
    %313 = arith.addf %311, %312 : vector<8x128xf32>
    %cst_118 = arith.constant 2.000000e+00 : f32
    %314 = vector.broadcast %cst_118 : f32 to vector<8x128xf32>
    %315 = arith.mulf %314, %313 : vector<8x128xf32>
    %316 = arith.select %5, %315, %313 : vector<8x128xi1>, vector<8x128xf32>
    %317 = arith.negf %316 : vector<8x128xf32>
    %318 = math.exp %317 : vector<8x128xf32>
    %cst_119 = arith.constant 1.000000e+00 : f32
    %319 = vector.broadcast %cst_119 : f32 to vector<8x128xf32>
    %320 = arith.addf %319, %318 : vector<8x128xf32>
    %321 = arith.divf %319, %320 : vector<8x128xf32>
    %cst_120 = arith.constant 2.000000e+00 : f32
    %322 = vector.broadcast %cst_120 : f32 to vector<8x128xf32>
    %323 = arith.mulf %322, %321 : vector<8x128xf32>
    %cst_121 = arith.constant 1.000000e+00 : f32
    %324 = vector.broadcast %cst_121 : f32 to vector<8x128xf32>
    %325 = arith.subf %323, %324 : vector<8x128xf32>
    %326 = arith.select %5, %325, %321 : vector<8x128xi1>, vector<8x128xf32>
    %327 = vector.extract_strided_slice %326 {offsets = [0, 0], sizes = [8, 32], strides = [1, 1]} : vector<8x128xf32> to vector<8x32xf32>
    %328 = vector.extract_strided_slice %326 {offsets = [0, 32], sizes = [8, 32], strides = [1, 1]} : vector<8x128xf32> to vector<8x32xf32>
    %329 = vector.extract_strided_slice %326 {offsets = [0, 64], sizes = [8, 32], strides = [1, 1]} : vector<8x128xf32> to vector<8x32xf32>
    %330 = vector.extract_strided_slice %326 {offsets = [0, 96], sizes = [8, 32], strides = [1, 1]} : vector<8x128xf32> to vector<8x32xf32>
    %331 = arith.mulf %328, %307 : vector<8x32xf32>
    %332 = arith.mulf %327, %329 : vector<8x32xf32>
    %333 = arith.addf %331, %332 : vector<8x32xf32>
    %334 = math.tanh %333 : vector<8x32xf32>
    %335 = arith.mulf %330, %334 : vector<8x32xf32>
    %c32_122 = arith.constant 32 : index
    %c0_123 = arith.constant 0 : index
    %336 = vector.load %arg13[%c32_122, %c0_123] : memref<56x32xf32, #tpu.memory_space<vmem>>, vector<8x32xf32>
    tpu.vector_store %arg13[%c32_122, %c0_123], %335 {strides = array<i32>} : memref<56x32xf32, #tpu.memory_space<vmem>>, vector<8x32xf32>,
    %c40_124 = arith.constant 40 : index
    %c0_125 = arith.constant 0 : index
    %337 = vector.load %arg11[%c40_124, %c0_125] : memref<56x128xf32, #tpu.memory_space<vmem>>, vector<8x128xf32>
    %cst_126 = arith.constant dense<0.000000e+00> : vector<8x128xf32>
    %338 = tpu.matmul %335, %205, %cst_126 {dimension_numbers = #tpu.dot_dimension_numbers<[1], [0], [0], [1], [0, 0, 1, 1], [], []>} : vector<8x32xf32>, vector<32x128xf32>, vector<8x128xf32> -> vector<8x128xf32>
    %339 = arith.addf %337, %338 : vector<8x128xf32>
    %cst_127 = arith.constant 2.000000e+00 : f32
    %340 = vector.broadcast %cst_127 : f32 to vector<8x128xf32>
    %341 = arith.mulf %340, %339 : vector<8x128xf32>
    %342 = arith.select %5, %341, %339 : vector<8x128xi1>, vector<8x128xf32>
    %343 = arith.negf %342 : vector<8x128xf32>
    %344 = math.exp %343 : vector<8x128xf32>
    %cst_128 = arith.constant 1.000000e+00 : f32
    %345 = vector.broadcast %cst_128 : f32 to vector<8x128xf32>
    %346 = arith.addf %345, %344 : vector<8x128xf32>
    %347 = arith.divf %345, %346 : vector<8x128xf32>
    %cst_129 = arith.constant 2.000000e+00 : f32
    %348 = vector.broadcast %cst_129 : f32 to vector<8x128xf32>
    %349 = arith.mulf %348, %347 : vector<8x128xf32>
    %cst_130 = arith.constant 1.000000e+00 : f32
    %350 = vector.broadcast %cst_130 : f32 to vector<8x128xf32>
    %351 = arith.subf %349, %350 : vector<8x128xf32>
    %352 = arith.select %5, %351, %347 : vector<8x128xi1>, vector<8x128xf32>
    %353 = vector.extract_strided_slice %352 {offsets = [0, 0], sizes = [8, 32], strides = [1, 1]} : vector<8x128xf32> to vector<8x32xf32>
    %354 = vector.extract_strided_slice %352 {offsets = [0, 32], sizes = [8, 32], strides = [1, 1]} : vector<8x128xf32> to vector<8x32xf32>
    %355 = vector.extract_strided_slice %352 {offsets = [0, 64], sizes = [8, 32], strides = [1, 1]} : vector<8x128xf32> to vector<8x32xf32>
    %356 = vector.extract_strided_slice %352 {offsets = [0, 96], sizes = [8, 32], strides = [1, 1]} : vector<8x128xf32> to vector<8x32xf32>
    %357 = arith.mulf %354, %333 : vector<8x32xf32>
    %358 = arith.mulf %353, %355 : vector<8x32xf32>
    %359 = arith.addf %357, %358 : vector<8x32xf32>
    %360 = math.tanh %359 : vector<8x32xf32>
    %361 = arith.mulf %356, %360 : vector<8x32xf32>
    %c40_131 = arith.constant 40 : index
    %c0_132 = arith.constant 0 : index
    %362 = vector.load %arg13[%c40_131, %c0_132] : memref<56x32xf32, #tpu.memory_space<vmem>>, vector<8x32xf32>
    tpu.vector_store %arg13[%c40_131, %c0_132], %361 {strides = array<i32>} : memref<56x32xf32, #tpu.memory_space<vmem>>, vector<8x32xf32>,
    %c48_133 = arith.constant 48 : index
    %c0_134 = arith.constant 0 : index
    %363 = vector.load %arg11[%c48_133, %c0_134] : memref<56x128xf32, #tpu.memory_space<vmem>>, vector<8x128xf32>
    %cst_135 = arith.constant dense<0.000000e+00> : vector<8x128xf32>
    %364 = tpu.matmul %361, %205, %cst_135 {dimension_numbers = #tpu.dot_dimension_numbers<[1], [0], [0], [1], [0, 0, 1, 1], [], []>} : vector<8x32xf32>, vector<32x128xf32>, vector<8x128xf32> -> vector<8x128xf32>
    %365 = arith.addf %363, %364 : vector<8x128xf32>
    %cst_136 = arith.constant 2.000000e+00 : f32
    %366 = vector.broadcast %cst_136 : f32 to vector<8x128xf32>
    %367 = arith.mulf %366, %365 : vector<8x128xf32>
    %368 = arith.select %5, %367, %365 : vector<8x128xi1>, vector<8x128xf32>
    %369 = arith.negf %368 : vector<8x128xf32>
    %370 = math.exp %369 : vector<8x128xf32>
    %cst_137 = arith.constant 1.000000e+00 : f32
    %371 = vector.broadcast %cst_137 : f32 to vector<8x128xf32>
    %372 = arith.addf %371, %370 : vector<8x128xf32>
    %373 = arith.divf %371, %372 : vector<8x128xf32>
    %cst_138 = arith.constant 2.000000e+00 : f32
    %374 = vector.broadcast %cst_138 : f32 to vector<8x128xf32>
    %375 = arith.mulf %374, %373 : vector<8x128xf32>
    %cst_139 = arith.constant 1.000000e+00 : f32
    %376 = vector.broadcast %cst_139 : f32 to vector<8x128xf32>
    %377 = arith.subf %375, %376 : vector<8x128xf32>
    %378 = arith.select %5, %377, %373 : vector<8x128xi1>, vector<8x128xf32>
    %379 = vector.extract_strided_slice %378 {offsets = [0, 0], sizes = [8, 32], strides = [1, 1]} : vector<8x128xf32> to vector<8x32xf32>
    %380 = vector.extract_strided_slice %378 {offsets = [0, 32], sizes = [8, 32], strides = [1, 1]} : vector<8x128xf32> to vector<8x32xf32>
    %381 = vector.extract_strided_slice %378 {offsets = [0, 64], sizes = [8, 32], strides = [1, 1]} : vector<8x128xf32> to vector<8x32xf32>
    %382 = vector.extract_strided_slice %378 {offsets = [0, 96], sizes = [8, 32], strides = [1, 1]} : vector<8x128xf32> to vector<8x32xf32>
    %383 = arith.mulf %380, %359 : vector<8x32xf32>
    %384 = arith.mulf %379, %381 : vector<8x32xf32>
    %385 = arith.addf %383, %384 : vector<8x32xf32>
    %386 = math.tanh %385 : vector<8x32xf32>
    %387 = arith.mulf %382, %386 : vector<8x32xf32>
    %c48_140 = arith.constant 48 : index
    %c0_141 = arith.constant 0 : index
    %388 = vector.load %arg13[%c48_140, %c0_141] : memref<56x32xf32, #tpu.memory_space<vmem>>, vector<8x32xf32>
    tpu.vector_store %arg13[%c48_140, %c0_141], %387 {strides = array<i32>} : memref<56x32xf32, #tpu.memory_space<vmem>>, vector<8x32xf32>,
    %c8_142 = arith.constant 8 : index
    %c0_143 = arith.constant 0 : index
    %389 = vector.load %arg13[%c8_142, %c0_143] : memref<56x32xf32, #tpu.memory_space<vmem>>, vector<48x32xf32>
    %c0_144 = arith.constant 0 : index
    %c0_145 = arith.constant 0 : index
    %390 = vector.load %arg8[%c0_144, %c0_145] : memref<32x128xf32, #tpu.memory_space<vmem>>, vector<32x128xf32>
    %cst_146 = arith.constant dense<0.000000e+00> : vector<48x128xf32>
    %391 = tpu.matmul %389, %390, %cst_146 {dimension_numbers = #tpu.dot_dimension_numbers<[1], [0], [0], [1], [0, 0, 1, 1], [], []>} : vector<48x32xf32>, vector<32x128xf32>, vector<48x128xf32> -> vector<48x128xf32>
    %c0_147 = arith.constant 0 : index
    %c0_148 = arith.constant 0 : index
    %392 = vector.load %arg9[%c0_147, %c0_148] : memref<1x128xf32, #tpu.memory_space<vmem>>, vector<1x128xf32>
    %393 = vector.broadcast %392 : vector<1x128xf32> to vector<48x128xf32>
    %394 = arith.addf %391, %393 : vector<48x128xf32>
    %c0_149 = arith.constant 0 : index
    %c0_150 = arith.constant 0 : index
    %395 = vector.load %arg10[%c0_149, %c0_150] : memref<48x128xf32, #tpu.memory_space<vmem>>, vector<48x128xf32>
    tpu.vector_store %arg10[%c0_149, %c0_150], %394 {strides = array<i32>} : memref<48x128xf32, #tpu.memory_space<vmem>>, vector<48x128xf32>,
    return
  }
  func.func @transform_0(%arg0: i32) -> (i32, i32) {
    %c0_i32 = arith.constant 0 : i32
    %c0_i32_0 = arith.constant 0 : i32
    %c0_i32_1 = arith.constant 0 : i32
    return %c0_i32, %c0_i32_0 : i32, i32
  }
  func.func @transform_1(%arg0: i32) -> (i32, i32) {
    %c0_i32 = arith.constant 0 : i32
    %c0_i32_0 = arith.constant 0 : i32
    %c0_i32_1 = arith.constant 0 : i32
    return %c0_i32, %c0_i32_0 : i32, i32
  }
  func.func @transform_2(%arg0: i32) -> (i32, i32) {
    %c0_i32 = arith.constant 0 : i32
    %c0_i32_0 = arith.constant 0 : i32
    %c0_i32_1 = arith.constant 0 : i32
    return %c0_i32, %c0_i32_0 : i32, i32
  }
  func.func @transform_3(%arg0: i32) -> (i32, i32) {
    %c0_i32 = arith.constant 0 : i32
    %c0_i32_0 = arith.constant 0 : i32
    %c0_i32_1 = arith.constant 0 : i32
    return %c0_i32, %c0_i32_0 : i32, i32
  }
  func.func @transform_4(%arg0: i32) -> (i32, i32) {
    %c0_i32 = arith.constant 0 : i32
    %c0_i32_0 = arith.constant 0 : i32
    %c0_i32_1 = arith.constant 0 : i32
    return %c0_i32, %c0_i32_0 : i32, i32
  }
  func.func @transform_5(%arg0: i32) -> (i32, i32) {
    %c0_i32 = arith.constant 0 : i32
    %c0_i32_0 = arith.constant 0 : i32
    %c0_i32_1 = arith.constant 0 : i32
    return %c0_i32, %c0_i32_0 : i32, i32
  }
  func.func @transform_6(%arg0: i32) -> (i32, i32) {
    %c0_i32 = arith.constant 0 : i32
    %c0_i32_0 = arith.constant 0 : i32
    %c0_i32_1 = arith.constant 0 : i32
    return %c0_i32, %c0_i32_0 : i32, i32
  }
  func.func @transform_7(%arg0: i32) -> (i32, i32) {
    %c0_i32 = arith.constant 0 : i32
    %c0_i32_0 = arith.constant 0 : i32
    %c0_i32_1 = arith.constant 0 : i32
    return %c0_i32, %c0_i32_0 : i32, i32
  }
  func.func @transform_8(%arg0: i32) -> (i32, i32) {
    %c0_i32 = arith.constant 0 : i32
    %c0_i32_0 = arith.constant 0 : i32
    %c0_i32_1 = arith.constant 0 : i32
    return %c0_i32, %c0_i32_0 : i32, i32
  }
  func.func @transform_9(%arg0: i32) -> (i32, i32) {
    %c0_i32 = arith.constant 0 : i32
    %c0_i32_0 = arith.constant 0 : i32
    %c0_i32_1 = arith.constant 0 : i32
    return %c0_i32, %c0_i32_0 : i32, i32
  }
}

</mosaic_0001>

<llo_original>
// kernel: decoder_forward.1
$region0: #{decoder_forward.1}
  #allocation0 [shape = 'u32[]', space=smem, size = 0x4, offset = 0x4, fixed_abs, tag = 'smem constant byte address 0x4 - core index']
  #allocation1 [shape = 'u32[144,128]{1,0:T(1,128)}', space=vmem, size = 0x12000, scoped, tag = 'internal scratch']
  #allocation2 [shape = 'f32[56,128]{1,0:T(8,128)}', space=vmem, size = 0x7000, scoped, tag = 'scratch operand']
  #allocation3 [shape = 'f32[56,32]{1,0:T(8,128)}', space=vmem, size = 0x7000, scoped, tag = 'scratch operand']
  #allocation4 [shape = 'f32[56,32]{1,0:T(8,128)}', space=vmem, size = 0x7000, scoped, tag = 'scratch operand']
  %s0 = inlined_call_operand.vmem [shape: f32[56,32], index: 0, kind: input, shape index: {}]
  %s1 = inlined_call_operand.vmem [shape: f32[32,128], index: 1, kind: input, shape index: {}]
  %s2 = inlined_call_operand.vmem [shape: f32[32,128], index: 2, kind: input, shape index: {}]
  %s3 = inlined_call_operand.vmem [shape: f32[1,128], index: 3, kind: input, shape index: {}]
  %s4 = inlined_call_operand.vmem [shape: f32[32,128], index: 4, kind: input, shape index: {}]
  %s5 = inlined_call_operand.vmem [shape: f32[32,128], index: 5, kind: input, shape index: {}]
  %s6 = inlined_call_operand.vmem [shape: f32[1,128], index: 6, kind: input, shape index: {}]
  %s7 = inlined_call_operand.vmem [shape: f32[32,128], index: 7, kind: input, shape index: {}]
  %s8 = inlined_call_operand.vmem [shape: f32[1,128], index: 8, kind: input, shape index: {}]
  %s9 = inlined_call_operand.vmem [shape: f32[48,128], index: 9, kind: output, shape index: {}]
  %s10 = sld [smem:[#allocation0]]
  $region46: #{decoder_forward.1} parent=0
    _
  %s12 = ssub.s32 1, %s10
  %s13 = scalar_select 0, %s12, %s10
  // Predicated region
  $region2: #{decoder_forward.1} parent=0 // pred_check
    _
  $region3: #{decoder_forward.1} parent=0 // pred_check_branch
    %15 = sbr.rel (0) target = $region5
  $region4: #{decoder_forward.1} parent=0 // pred_region
    _
  $region5: #{decoder_forward.1} parent=0 // pred_fallthru
    _
  // Predicated region
  $region6: #{decoder_forward.1} parent=0 // pred_check
    _
  $region7: #{decoder_forward.1} parent=0 // pred_check_branch
    %17 = sbr.rel (0) target = $region9
  $region8: #{decoder_forward.1} parent=0 // pred_region
    _
  $region9: #{decoder_forward.1} parent=0 // pred_fallthru
    _
  // Predicated region
  $region10: #{decoder_forward.1} parent=0 // pred_check
    _
  $region11: #{decoder_forward.1} parent=0 // pred_check_branch
    %19 = sbr.rel (0) target = $region13
  $region12: #{decoder_forward.1} parent=0 // pred_region
    _
  $region13: #{decoder_forward.1} parent=0 // pred_fallthru
    _
  // Predicated region
  $region14: #{decoder_forward.1} parent=0 // pred_check
    _
  $region15: #{decoder_forward.1} parent=0 // pred_check_branch
    %21 = sbr.rel (0) target = $region17
  $region16: #{decoder_forward.1} parent=0 // pred_region
    _
  $region17: #{decoder_forward.1} parent=0 // pred_fallthru
    _
  // Predicated region
  $region18: #{decoder_forward.1} parent=0 // pred_check
    _
  $region19: #{decoder_forward.1} parent=0 // pred_check_branch
    %23 = sbr.rel (0) target = $region21
  $region20: #{decoder_forward.1} parent=0 // pred_region
    _
  $region21: #{decoder_forward.1} parent=0 // pred_fallthru
    _
  // Predicated region
  $region22: #{decoder_forward.1} parent=0 // pred_check
    _
  $region23: #{decoder_forward.1} parent=0 // pred_check_branch
    %25 = sbr.rel (0) target = $region25
  $region24: #{decoder_forward.1} parent=0 // pred_region
    _
  $region25: #{decoder_forward.1} parent=0 // pred_fallthru
    _
  // Predicated region
  $region26: #{decoder_forward.1} parent=0 // pred_check
    _
  $region27: #{decoder_forward.1} parent=0 // pred_check_branch
    %27 = sbr.rel (0) target = $region29
  $region28: #{decoder_forward.1} parent=0 // pred_region
    _
  $region29: #{decoder_forward.1} parent=0 // pred_fallthru
    _
  // Predicated region
  $region30: #{decoder_forward.1} parent=0 // pred_check
    _
  $region31: #{decoder_forward.1} parent=0 // pred_check_branch
    %29 = sbr.rel (0) target = $region33
  $region32: #{decoder_forward.1} parent=0 // pred_region
    _
  $region33: #{decoder_forward.1} parent=0 // pred_fallthru
    _
  // Predicated region
  $region34: #{decoder_forward.1} parent=0 // pred_check
    _
  $region35: #{decoder_forward.1} parent=0 // pred_check_branch
    %31 = sbr.rel (0) target = $region37
  $region36: #{decoder_forward.1} parent=0 // pred_region
    _
  $region37: #{decoder_forward.1} parent=0 // pred_fallthru
    _
  %v32 = vlaneseq
  %v33 = vand.u32 %v32, 127
  %vm34 = vcmp.ge.s32.totalorder %v33, 64
  %vm35 = vcmp.lt.s32.totalorder %v33, 96
  %vm36 = vmand %vm34, %vm35
  %v37 = vld [vmem:[%s0] sm:$0xff]
  %v38 = vld [vmem:[%s0 + $0x8] sm:$0xff]
  %v39 = vld [vmem:[%s0 + $0x10] sm:$0xff]
  %v40 = vld [vmem:[%s0 + $0x18] sm:$0xff]
  %v41 = vld [vmem:[%s0 + $0x20] sm:$0xff]
  %v42 = vld [vmem:[%s0 + $0x28] sm:$0xff]
  %v43 = vld [vmem:[%s0 + $0x30] sm:$0xff]
  %v44 = vld [vmem:[%s1] sm:$0xff]
  %v45 = vld [vmem:[%s1 + $0x8] sm:$0xff]
  %v46 = vld [vmem:[%s1 + $0x10] sm:$0xff]
  %v47 = vld [vmem:[%s1 + $0x18] sm:$0xff]
  %v48 = vld [vmem:[%s3] sm:$0x1]
  %v50 = vlaneseq
  %v51 = vshrl.u32 %v50, 7
  %v52 = vsub.s32 0, %v51
  %v53 = vrot.slane %v48, %v52
  %vm55 = vcmask 261120
  %v57 = vsel %vm55, %v37, 0
  %v60 = vsel %vm55, %v38, 0
  %v63 = vsel %vm55, %v39, 0
  %v66 = vsel %vm55, %v40, 0
  %v69 = vsel %vm55, %v41, 0
  %v72 = vsel %vm55, %v42, 0
  %v75 = vsel %vm55, %v43, 0
  %77 = vmatprep.subr.mxu0 0.0
  %78 = vmatpush1.msra.mxu0 %v44
  %79 = vmatprep.subr.mxu0 0.0
  %80 = vmatpush1.msra.mxu0 %v45
  %81 = vmatprep.subr.mxu0 0.0
  %82 = vmatpush1.msra.mxu0 %v46
  %83 = vmatprep.subr.mxu0 0.0
  %84 = vmatpush1.msra.mxu0 %v47
  %85 = vmatprep.subr.mxu0 0.0
  %86 = vmatpush1.msra.mxu0 0.0
  %87 = vmatprep.subr.mxu0 0.0
  %88 = vmatpush1.msra.mxu0 0.0
  %89 = vmatprep.subr.mxu0 0.0
  %90 = vmatpush1.msra.mxu0 0.0
  %91 = vmatprep.subr.mxu0 0.0
  %92 = vmatpush1.msra.mxu0 0.0
  %93 = vmatprep.subr.mxu0 0.0
  %94 = vmatpush1.msra.mxu0 0.0
  %95 = vmatprep.subr.mxu0 0.0
  %96 = vmatpush1.msra.mxu0 0.0
  %97 = vmatprep.subr.mxu0 0.0
  %98 = vmatpush1.msra.mxu0 0.0
  %99 = vmatprep.subr.mxu0 0.0
  %100 = vmatpush1.msra.mxu0 0.0
  %101 = vmatprep.subr.mxu0 0.0
  %102 = vmatpush1.msra.mxu0 0.0
  %103 = vmatprep.subr.mxu0 0.0
  %104 = vmatpush1.msra.mxu0 0.0
  %105 = vmatprep.subr.mxu0 0.0
  %106 = vmatpush1.msra.mxu0 0.0
  %107 = vmatprep.subr.mxu0 0.0
  %108 = vmatpush1.msra.mxu0 0.0
  %109 = vmatprep.subr.mxu0 0.0
  %110 = vmatpush1.msra.mxu0 0.0
  %111 = vmatprep.subr.mxu0 0.0
  %112 = vmatpush1.msra.mxu0 0.0
  %113 = vmatprep.subr.mxu0 0.0
  %114 = vmatpush1.msra.mxu0 0.0
  %115 = vmatprep.subr.mxu0 0.0
  %116 = vmatpush1.msra.mxu0 0.0
  %117 = vmatprep.subr.mxu0 0.0
  %118 = vmatpush1.msra.mxu0 0.0
  %119 = vmatprep.subr.mxu0 0.0
  %120 = vmatpush1.msra.mxu0 0.0
  %121 = vmatprep.subr.mxu0 0.0
  %122 = vmatpush1.msra.mxu0 0.0
  %123 = vmatprep.subr.mxu0 0.0
  %124 = vmatpush1.msra.mxu0 0.0
  %125 = vmatprep.subr.mxu0 0.0
  %126 = vmatpush1.msra.mxu0 0.0
  %127 = vmatprep.subr.mxu0 0.0
  %128 = vmatpush1.msra.mxu0 0.0
  %129 = vmatprep.subr.mxu0 0.0
  %130 = vmatpush1.msra.mxu0 0.0
  %131 = vmatprep.subr.mxu0 0.0
  %132 = vmatpush1.msra.mxu0 0.0
  %133 = vmatprep.subr.mxu0 0.0
  %134 = vmatpush1.msra.mxu0 0.0
  %135 = vmatprep.subr.mxu0 0.0
  %136 = vmatpush1.msra.mxu0 0.0
  %137 = vmatprep.subr.mxu0 0.0
  %138 = vmatpush1.msra.mxu0 0.0
  %139 = vmatprep.subr.mxu0 0.0
  %140 = vmatpush1.msra.mxu0 0.0
  %141 = vmatprep.mubr.f32.mxu0 0.0
  %142 = vmatmul.mubr.f32.gmra.mrb[0].mxu0 %v57
  %v143 = vpop.f32.mrb[0].mxu0
  %v144 = vadd.f32 %v53, %v143
  %v145 = vpop.f32.mrb[0].mxu0
  %146 = vmatprep.mubr.f32.mxu0 0.0
  %147 = vmatmul.mubr.f32.gmra.mrb[0].mxu0 %v60
  %v148 = vpop.f32.mrb[0].mxu0
  %v149 = vadd.f32 %v53, %v148
  %v150 = vpop.f32.mrb[0].mxu0
  %151 = vmatprep.mubr.f32.mxu0 0.0
  %152 = vmatmul.mubr.f32.gmra.mrb[0].mxu0 %v63
  %v153 = vpop.f32.mrb[0].mxu0
  %v154 = vadd.f32 %v53, %v153
  %v155 = vpop.f32.mrb[0].mxu0
  %156 = vmatprep.mubr.f32.mxu0 0.0
  %157 = vmatmul.mubr.f32.gmra.mrb[0].mxu0 %v66
  %v158 = vpop.f32.mrb[0].mxu0
  %v159 = vadd.f32 %v53, %v158
  %v160 = vpop.f32.mrb[0].mxu0
  %161 = vmatprep.mubr.f32.mxu0 0.0
  %162 = vmatmul.mubr.f32.gmra.mrb[0].mxu0 %v69
  %v163 = vpop.f32.mrb[0].mxu0
  %v164 = vadd.f32 %v53, %v163
  %v165 = vpop.f32.mrb[0].mxu0
  %166 = vmatprep.mubr.f32.mxu0 0.0
  %167 = vmatmul.mubr.f32.gmra.mrb[0].mxu0 %v72
  %v168 = vpop.f32.mrb[0].mxu0
  %v169 = vadd.f32 %v53, %v168
  %v170 = vpop.f32.mrb[0].mxu0
  %171 = vmatprep.mubr.f32.mxu0 0.0
  %172 = vmatmul.mubr.f32.gmra.mrb[0].mxu0 %v75
  %v173 = vpop.f32.mrb[0].mxu0
  %v174 = vadd.f32 %v53, %v173
  %v175 = vpop.f32.mrb[0].mxu0
  %176 = vdwg.mxu0
  %177 = vst [vmem:[#allocation2] sm:$0xff] %v144
  %178 = vst [vmem:[#allocation2 + $0x8] sm:$0xff] %v149
  %179 = vst [vmem:[#allocation2 + $0x10] sm:$0xff] %v154
  %180 = vst [vmem:[#allocation2 + $0x18] sm:$0xff] %v159
  %181 = vst [vmem:[#allocation2 + $0x20] sm:$0xff] %v164
  %182 = vst [vmem:[#allocation2 + $0x28] sm:$0xff] %v169
  %183 = vst [vmem:[#allocation2 + $0x30] sm:$0xff] %v174
  %v184 = vld [vmem:[%s2] sm:$0xff]
  %v185 = vld [vmem:[%s2 + $0x8] sm:$0xff]
  %v186 = vld [vmem:[%s2 + $0x10] sm:$0xff]
  %v187 = vld [vmem:[%s2 + $0x18] sm:$0xff]
  %v188 = vld [vmem:[#allocation2] sm:$0xff]
  %v190 = vsel %vm55, 0.0, 0
  %192 = vmatprep.subr.mxu0 0.0
  %193 = vmatpush1.msra.mxu0 %v184
  %194 = vmatprep.subr.mxu0 0.0
  %195 = vmatpush1.msra.mxu0 %v185
  %196 = vmatprep.subr.mxu0 0.0
  %197 = vmatpush1.msra.mxu0 %v186
  %198 = vmatprep.subr.mxu0 0.0
  %199 = vmatpush1.msra.mxu0 %v187
  %200 = vmatprep.subr.mxu0 0.0
  %201 = vmatpush1.msra.mxu0 0.0
  %202 = vmatprep.subr.mxu0 0.0
  %203 = vmatpush1.msra.mxu0 0.0
  %204 = vmatprep.subr.mxu0 0.0
  %205 = vmatpush1.msra.mxu0 0.0
  %206 = vmatprep.subr.mxu0 0.0
  %207 = vmatpush1.msra.mxu0 0.0
  %208 = vmatprep.subr.mxu0 0.0
  %209 = vmatpush1.msra.mxu0 0.0
  %210 = vmatprep.subr.mxu0 0.0
  %211 = vmatpush1.msra.mxu0 0.0
  %212 = vmatprep.subr.mxu0 0.0
  %213 = vmatpush1.msra.mxu0 0.0
  %214 = vmatprep.subr.mxu0 0.0
  %215 = vmatpush1.msra.mxu0 0.0
  %216 = vmatprep.subr.mxu0 0.0
  %217 = vmatpush1.msra.mxu0 0.0
  %218 = vmatprep.subr.mxu0 0.0
  %219 = vmatpush1.msra.mxu0 0.0
  %220 = vmatprep.subr.mxu0 0.0
  %221 = vmatpush1.msra.mxu0 0.0
  %222 = vmatprep.subr.mxu0 0.0
  %223 = vmatpush1.msra.mxu0 0.0
  %224 = vmatprep.subr.mxu0 0.0
  %225 = vmatpush1.msra.mxu0 0.0
  %226 = vmatprep.subr.mxu0 0.0
  %227 = vmatpush1.msra.mxu0 0.0
  %228 = vmatprep.subr.mxu0 0.0
  %229 = vmatpush1.msra.mxu0 0.0
  %230 = vmatprep.subr.mxu0 0.0
  %231 = vmatpush1.msra.mxu0 0.0
  %232 = vmatprep.subr.mxu0 0.0
  %233 = vmatpush1.msra.mxu0 0.0
  %234 = vmatprep.subr.mxu0 0.0
  %235 = vmatpush1.msra.mxu0 0.0
  %236 = vmatprep.subr.mxu0 0.0
  %237 = vmatpush1.msra.mxu0 0.0
  %238 = vmatprep.subr.mxu0 0.0
  %239 = vmatpush1.msra.mxu0 0.0
  %240 = vmatprep.subr.mxu0 0.0
  %241 = vmatpush1.msra.mxu0 0.0
  %242 = vmatprep.subr.mxu0 0.0
  %243 = vmatpush1.msra.mxu0 0.0
  %244 = vmatprep.subr.mxu0 0.0
  %245 = vmatpush1.msra.mxu0 0.0
  %246 = vmatprep.subr.mxu0 0.0
  %247 = vmatpush1.msra.mxu0 0.0
  %248 = vmatprep.subr.mxu0 0.0
  %249 = vmatpush1.msra.mxu0 0.0
  %250 = vmatprep.subr.mxu0 0.0
  %251 = vmatpush1.msra.mxu0 0.0
  %252 = vmatprep.subr.mxu0 0.0
  %253 = vmatpush1.msra.mxu0 0.0
  %254 = vmatprep.subr.mxu0 0.0
  %255 = vmatpush1.msra.mxu0 0.0
  %256 = vmatprep.mubr.f32.mxu0 0.0
  %257 = vmatmul.mubr.f32.gmra.mrb[0].mxu0 %v190
  %v258 = vpop.f32.mrb[0].mxu0
  %v259 = vadd.f32 0.0, %v258
  %v260 = vpop.f32.mrb[0].mxu0
  %261 = vdwg.mxu0
  %v262 = vadd.f32 %v188, %v259
  %v263 = vmul.f32 %v262, 2.0
  %v264 = vsel %vm36, %v263, %v262
  %v265 = vxor.u32 %v264, 2147483648
  %v266 = vmul.f32 %v265, 1.442695
  %v267 = vpow.pop %v266
  %v268 = vadd.f32 %v267, 1.0
  %v269 = vrcp.pop %v268
  %v270 = vmul.f32 1.0, %v269
  %v271 = vmul.f32 %v270, 2.0
  %v272 = vsub.f32 %v271, 1.0
  %v273 = vsel %vm36, %v272, %v270
  %v274 = vmul.f32 %v273, 0.0
  %276 = vrot.lane.b32.xlu0 %v273, 64
  %v277 = vpop.permute.xlu0 %276
  %v279 = vmul.f32 %v273, %v277
  %281 = vrot.lane.b32.xlu0 %v279, 32
  %v282 = vpop.permute.xlu0 %281
  %v284 = vadd.f32 %v274, %v282
  %v285 = vtanh.pop %v284
  %287 = vrot.lane.b32.xlu0 %v285, 64
  %v288 = vpop.permute.xlu0 %287
  %v290 = vmul.f32 %v273, %v288
  %292 = vrot.lane.b32.xlu0 %v290, 32
  %v293 = vpop.permute.xlu0 %292
  %295 = vst.msk [vmem:[#allocation3] sm:$0xff] %vm55, %v293
  %v296 = vld [vmem:[#allocation2 + $0x8] sm:$0xff]
  %v297 = vsel %vm55, %v293, 0
  %299 = vmatprep.subr.mxu0 0.0
  %300 = vmatpush1.msra.mxu0 %v184
  %301 = vmatprep.subr.mxu0 0.0
  %302 = vmatpush1.msra.mxu0 %v185
  %303 = vmatprep.subr.mxu0 0.0
  %304 = vmatpush1.msra.mxu0 %v186
  %305 = vmatprep.subr.mxu0 0.0
  %306 = vmatpush1.msra.mxu0 %v187
  %307 = vmatprep.subr.mxu0 0.0
  %308 = vmatpush1.msra.mxu0 0.0
  %309 = vmatprep.subr.mxu0 0.0
  %310 = vmatpush1.msra.mxu0 0.0
  %311 = vmatprep.subr.mxu0 0.0
  %312 = vmatpush1.msra.mxu0 0.0
  %313 = vmatprep.subr.mxu0 0.0
  %314 = vmatpush1.msra.mxu0 0.0
  %315 = vmatprep.subr.mxu0 0.0
  %316 = vmatpush1.msra.mxu0 0.0
  %317 = vmatprep.subr.mxu0 0.0
  %318 = vmatpush1.msra.mxu0 0.0
  %319 = vmatprep.subr.mxu0 0.0
  %320 = vmatpush1.msra.mxu0 0.0
  %321 = vmatprep.subr.mxu0 0.0
  %322 = vmatpush1.msra.mxu0 0.0
  %323 = vmatprep.subr.mxu0 0.0
  %324 = vmatpush1.msra.mxu0 0.0
  %325 = vmatprep.subr.mxu0 0.0
  %326 = vmatpush1.msra.mxu0 0.0
  %327 = vmatprep.subr.mxu0 0.0
  %328 = vmatpush1.msra.mxu0 0.0
  %329 = vmatprep.subr.mxu0 0.0
  %330 = vmatpush1.msra.mxu0 0.0
  %331 = vmatprep.subr.mxu0 0.0
  %332 = vmatpush1.msra.mxu0 0.0
  %333 = vmatprep.subr.mxu0 0.0
  %334 = vmatpush1.msra.mxu0 0.0
  %335 = vmatprep.subr.mxu0 0.0
  %336 = vmatpush1.msra.mxu0 0.0
  %337 = vmatprep.subr.mxu0 0.0
  %338 = vmatpush1.msra.mxu0 0.0
  %339 = vmatprep.subr.mxu0 0.0
  %340 = vmatpush1.msra.mxu0 0.0
  %341 = vmatprep.subr.mxu0 0.0
  %342 = vmatpush1.msra.mxu0 0.0
  %343 = vmatprep.subr.mxu0 0.0
  %344 = vmatpush1.msra.mxu0 0.0
  %345 = vmatprep.subr.mxu0 0.0
  %346 = vmatpush1.msra.mxu0 0.0
  %347 = vmatprep.subr.mxu0 0.0
  %348 = vmatpush1.msra.mxu0 0.0
  %349 = vmatprep.subr.mxu0 0.0
  %350 = vmatpush1.msra.mxu0 0.0
  %351 = vmatprep.subr.mxu0 0.0
  %352 = vmatpush1.msra.mxu0 0.0
  %353 = vmatprep.subr.mxu0 0.0
  %354 = vmatpush1.msra.mxu0 0.0
  %355 = vmatprep.subr.mxu0 0.0
  %356 = vmatpush1.msra.mxu0 0.0
  %357 = vmatprep.subr.mxu0 0.0
  %358 = vmatpush1.msra.mxu0 0.0
  %359 = vmatprep.subr.mxu0 0.0
  %360 = vmatpush1.msra.mxu0 0.0
  %361 = vmatprep.subr.mxu0 0.0
  %362 = vmatpush1.msra.mxu0 0.0
  %363 = vmatprep.mubr.f32.mxu0 0.0
  %364 = vmatmul.mubr.f32.gmra.mrb[0].mxu0 %v297
  %v365 = vpop.f32.mrb[0].mxu0
  %v366 = vadd.f32 0.0, %v365
  %v367 = vpop.f32.mrb[0].mxu0
  %368 = vdwg.mxu0
  %v369 = vadd.f32 %v296, %v366
  %v370 = vmul.f32 %v369, 2.0
  %v371 = vsel %vm36, %v370, %v369
  %v372 = vxor.u32 %v371, 2147483648
  %v373 = vmul.f32 %v372, 1.442695
  %v374 = vpow.pop %v373
  %v375 = vadd.f32 %v374, 1.0
  %v376 = vrcp.pop %v375
  %v377 = vmul.f32 1.0, %v376
  %v378 = vmul.f32 %v377, 2.0
  %v379 = vsub.f32 %v378, 1.0
  %v380 = vsel %vm36, %v379, %v377
  %v381 = vmul.f32 %v380, %v284
  %383 = vrot.lane.b32.xlu0 %v380, 64
  %v384 = vpop.permute.xlu0 %383
  %v386 = vmul.f32 %v380, %v384
  %388 = vrot.lane.b32.xlu0 %v386, 32
  %v389 = vpop.permute.xlu0 %388
  %v391 = vadd.f32 %v381, %v389
  %v392 = vtanh.pop %v391
  %394 = vrot.lane.b32.xlu0 %v392, 64
  %v395 = vpop.permute.xlu0 %394
  %v397 = vmul.f32 %v380, %v395
  %399 = vrot.lane.b32.xlu0 %v397, 32
  %v400 = vpop.permute.xlu0 %399
  %402 = vst.msk [vmem:[#allocation3 + $0x8] sm:$0xff] %vm55, %v400
  %v403 = vld [vmem:[#allocation2 + $0x10] sm:$0xff]
  %v404 = vsel %vm55, %v400, 0
  %406 = vmatprep.subr.mxu0 0.0
  %407 = vmatpush1.msra.mxu0 %v184
  %408 = vmatprep.subr.mxu0 0.0
  %409 = vmatpush1.msra.mxu0 %v185
  %410 = vmatprep.subr.mxu0 0.0
  %411 = vmatpush1.msra.mxu0 %v186
  %412 = vmatprep.subr.mxu0 0.0
  %413 = vmatpush1.msra.mxu0 %v187
  %414 = vmatprep.subr.mxu0 0.0
  %415 = vmatpush1.msra.mxu0 0.0
  %416 = vmatprep.subr.mxu0 0.0
  %417 = vmatpush1.msra.mxu0 0.0
  %418 = vmatprep.subr.mxu0 0.0
  %419 = vmatpush1.msra.mxu0 0.0
  %420 = vmatprep.subr.mxu0 0.0
  %421 = vmatpush1.msra.mxu0 0.0
  %422 = vmatprep.subr.mxu0 0.0
  %423 = vmatpush1.msra.mxu0 0.0
  %424 = vmatprep.subr.mxu0 0.0
  %425 = vmatpush1.msra.mxu0 0.0
  %426 = vmatprep.subr.mxu0 0.0
  %427 = vmatpush1.msra.mxu0 0.0
  %428 = vmatprep.subr.mxu0 0.0
  %429 = vmatpush1.msra.mxu0 0.0
  %430 = vmatprep.subr.mxu0 0.0
  %431 = vmatpush1.msra.mxu0 0.0
  %432 = vmatprep.subr.mxu0 0.0
  %433 = vmatpush1.msra.mxu0 0.0
  %434 = vmatprep.subr.mxu0 0.0
  %435 = vmatpush1.msra.mxu0 0.0
  %436 = vmatprep.subr.mxu0 0.0
  %437 = vmatpush1.msra.mxu0 0.0
  %438 = vmatprep.subr.mxu0 0.0
  %439 = vmatpush1.msra.mxu0 0.0
  %440 = vmatprep.subr.mxu0 0.0
  %441 = vmatpush1.msra.mxu0 0.0
  %442 = vmatprep.subr.mxu0 0.0
  %443 = vmatpush1.msra.mxu0 0.0
  %444 = vmatprep.subr.mxu0 0.0
  %445 = vmatpush1.msra.mxu0 0.0
  %446 = vmatprep.subr.mxu0 0.0
  %447 = vmatpush1.msra.mxu0 0.0
  %448 = vmatprep.subr.mxu0 0.0
  %449 = vmatpush1.msra.mxu0 0.0
  %450 = vmatprep.subr.mxu0 0.0
  %451 = vmatpush1.msra.mxu0 0.0
  %452 = vmatprep.subr.mxu0 0.0
  %453 = vmatpush1.msra.mxu0 0.0
  %454 = vmatprep.subr.mxu0 0.0
  %455 = vmatpush1.msra.mxu0 0.0
  %456 = vmatprep.subr.mxu0 0.0
  %457 = vmatpush1.msra.mxu0 0.0
  %458 = vmatprep.subr.mxu0 0.0
  %459 = vmatpush1.msra.mxu0 0.0
  %460 = vmatprep.subr.mxu0 0.0
  %461 = vmatpush1.msra.mxu0 0.0
  %462 = vmatprep.subr.mxu0 0.0
  %463 = vmatpush1.msra.mxu0 0.0
  %464 = vmatprep.subr.mxu0 0.0
  %465 = vmatpush1.msra.mxu0 0.0
  %466 = vmatprep.subr.mxu0 0.0
  %467 = vmatpush1.msra.mxu0 0.0
  %468 = vmatprep.subr.mxu0 0.0
  %469 = vmatpush1.msra.mxu0 0.0
  %470 = vmatprep.mubr.f32.mxu0 0.0
  %471 = vmatmul.mubr.f32.gmra.mrb[0].mxu0 %v404
  %v472 = vpop.f32.mrb[0].mxu0
  %v473 = vadd.f32 0.0, %v472
  %v474 = vpop.f32.mrb[0].mxu0
  %475 = vdwg.mxu0
  %v476 = vadd.f32 %v403, %v473
  %v477 = vmul.f32 %v476, 2.0
  %v478 = vsel %vm36, %v477, %v476
  %v479 = vxor.u32 %v478, 2147483648
  %v480 = vmul.f32 %v479, 1.442695
  %v481 = vpow.pop %v480
  %v482 = vadd.f32 %v481, 1.0
  %v483 = vrcp.pop %v482
  %v484 = vmul.f32 1.0, %v483
  %v485 = vmul.f32 %v484, 2.0
  %v486 = vsub.f32 %v485, 1.0
  %v487 = vsel %vm36, %v486, %v484
  %v488 = vmul.f32 %v487, %v391
  %490 = vrot.lane.b32.xlu0 %v487, 64
  %v491 = vpop.permute.xlu0 %490
  %v493 = vmul.f32 %v487, %v491
  %495 = vrot.lane.b32.xlu0 %v493, 32
  %v496 = vpop.permute.xlu0 %495
  %v498 = vadd.f32 %v488, %v496
  %v499 = vtanh.pop %v498
  %501 = vrot.lane.b32.xlu0 %v499, 64
  %v502 = vpop.permute.xlu0 %501
  %v504 = vmul.f32 %v487, %v502
  %506 = vrot.lane.b32.xlu0 %v504, 32
  %v507 = vpop.permute.xlu0 %506
  %509 = vst.msk [vmem:[#allocation3 + $0x10] sm:$0xff] %vm55, %v507
  %v510 = vld [vmem:[#allocation2 + $0x18] sm:$0xff]
  %v511 = vsel %vm55, %v507, 0
  %513 = vmatprep.subr.mxu0 0.0
  %514 = vmatpush1.msra.mxu0 %v184
  %515 = vmatprep.subr.mxu0 0.0
  %516 = vmatpush1.msra.mxu0 %v185
  %517 = vmatprep.subr.mxu0 0.0
  %518 = vmatpush1.msra.mxu0 %v186
  %519 = vmatprep.subr.mxu0 0.0
  %520 = vmatpush1.msra.mxu0 %v187
  %521 = vmatprep.subr.mxu0 0.0
  %522 = vmatpush1.msra.mxu0 0.0
  %523 = vmatprep.subr.mxu0 0.0
  %524 = vmatpush1.msra.mxu0 0.0
  %525 = vmatprep.subr.mxu0 0.0
  %526 = vmatpush1.msra.mxu0 0.0
  %527 = vmatprep.subr.mxu0 0.0
  %528 = vmatpush1.msra.mxu0 0.0
  %529 = vmatprep.subr.mxu0 0.0
  %530 = vmatpush1.msra.mxu0 0.0
  %531 = vmatprep.subr.mxu0 0.0
  %532 = vmatpush1.msra.mxu0 0.0
  %533 = vmatprep.subr.mxu0 0.0
  %534 = vmatpush1.msra.mxu0 0.0
  %535 = vmatprep.subr.mxu0 0.0
  %536 = vmatpush1.msra.mxu0 0.0
  %537 = vmatprep.subr.mxu0 0.0
  %538 = vmatpush1.msra.mxu0 0.0
  %539 = vmatprep.subr.mxu0 0.0
  %540 = vmatpush1.msra.mxu0 0.0
  %541 = vmatprep.subr.mxu0 0.0
  %542 = vmatpush1.msra.mxu0 0.0
  %543 = vmatprep.subr.mxu0 0.0
  %544 = vmatpush1.msra.mxu0 0.0
  %545 = vmatprep.subr.mxu0 0.0
  %546 = vmatpush1.msra.mxu0 0.0
  %547 = vmatprep.subr.mxu0 0.0
  %548 = vmatpush1.msra.mxu0 0.0
  %549 = vmatprep.subr.mxu0 0.0
  %550 = vmatpush1.msra.mxu0 0.0
  %551 = vmatprep.subr.mxu0 0.0
  %552 = vmatpush1.msra.mxu0 0.0
  %553 = vmatprep.subr.mxu0 0.0
  %554 = vmatpush1.msra.mxu0 0.0
  %555 = vmatprep.subr.mxu0 0.0
  %556 = vmatpush1.msra.mxu0 0.0
  %557 = vmatprep.subr.mxu0 0.0
  %558 = vmatpush1.msra.mxu0 0.0
  %559 = vmatprep.subr.mxu0 0.0
  %560 = vmatpush1.msra.mxu0 0.0
  %561 = vmatprep.subr.mxu0 0.0
  %562 = vmatpush1.msra.mxu0 0.0
  %563 = vmatprep.subr.mxu0 0.0
  %564 = vmatpush1.msra.mxu0 0.0
  %565 = vmatprep.subr.mxu0 0.0
  %566 = vmatpush1.msra.mxu0 0.0
  %567 = vmatprep.subr.mxu0 0.0
  %568 = vmatpush1.msra.mxu0 0.0
  %569 = vmatprep.subr.mxu0 0.0
  %570 = vmatpush1.msra.mxu0 0.0
  %571 = vmatprep.subr.mxu0 0.0
  %572 = vmatpush1.msra.mxu0 0.0
  %573 = vmatprep.subr.mxu0 0.0
  %574 = vmatpush1.msra.mxu0 0.0
  %575 = vmatprep.subr.mxu0 0.0
  %576 = vmatpush1.msra.mxu0 0.0
  %577 = vmatprep.mubr.f32.mxu0 0.0
  %578 = vmatmul.mubr.f32.gmra.mrb[0].mxu0 %v511
  %v579 = vpop.f32.mrb[0].mxu0
  %v580 = vadd.f32 0.0, %v579
  %v581 = vpop.f32.mrb[0].mxu0
  %582 = vdwg.mxu0
  %v583 = vadd.f32 %v510, %v580
  %v584 = vmul.f32 %v583, 2.0
  %v585 = vsel %vm36, %v584, %v583
  %v586 = vxor.u32 %v585, 2147483648
  %v587 = vmul.f32 %v586, 1.442695
  %v588 = vpow.pop %v587
  %v589 = vadd.f32 %v588, 1.0
  %v590 = vrcp.pop %v589
  %v591 = vmul.f32 1.0, %v590
  %v592 = vmul.f32 %v591, 2.0
  %v593 = vsub.f32 %v592, 1.0
  %v594 = vsel %vm36, %v593, %v591
  %v595 = vmul.f32 %v594, %v498
  %597 = vrot.lane.b32.xlu0 %v594, 64
  %v598 = vpop.permute.xlu0 %597
  %v600 = vmul.f32 %v594, %v598
  %602 = vrot.lane.b32.xlu0 %v600, 32
  %v603 = vpop.permute.xlu0 %602
  %v605 = vadd.f32 %v595, %v603
  %v606 = vtanh.pop %v605
  %608 = vrot.lane.b32.xlu0 %v606, 64
  %v609 = vpop.permute.xlu0 %608
  %v611 = vmul.f32 %v594, %v609
  %613 = vrot.lane.b32.xlu0 %v611, 32
  %v614 = vpop.permute.xlu0 %613
  %616 = vst.msk [vmem:[#allocation3 + $0x18] sm:$0xff] %vm55, %v614
  %v617 = vld [vmem:[#allocation2 + $0x20] sm:$0xff]
  %v618 = vsel %vm55, %v614, 0
  %620 = vmatprep.subr.mxu0 0.0
  %621 = vmatpush1.msra.mxu0 %v184
  %622 = vmatprep.subr.mxu0 0.0
  %623 = vmatpush1.msra.mxu0 %v185
  %624 = vmatprep.subr.mxu0 0.0
  %625 = vmatpush1.msra.mxu0 %v186
  %626 = vmatprep.subr.mxu0 0.0
  %627 = vmatpush1.msra.mxu0 %v187
  %628 = vmatprep.subr.mxu0 0.0
  %629 = vmatpush1.msra.mxu0 0.0
  %630 = vmatprep.subr.mxu0 0.0
  %631 = vmatpush1.msra.mxu0 0.0
  %632 = vmatprep.subr.mxu0 0.0
  %633 = vmatpush1.msra.mxu0 0.0
  %634 = vmatprep.subr.mxu0 0.0
  %635 = vmatpush1.msra.mxu0 0.0
  %636 = vmatprep.subr.mxu0 0.0
  %637 = vmatpush1.msra.mxu0 0.0
  %638 = vmatprep.subr.mxu0 0.0
  %639 = vmatpush1.msra.mxu0 0.0
  %640 = vmatprep.subr.mxu0 0.0
  %641 = vmatpush1.msra.mxu0 0.0
  %642 = vmatprep.subr.mxu0 0.0
  %643 = vmatpush1.msra.mxu0 0.0
  %644 = vmatprep.subr.mxu0 0.0
  %645 = vmatpush1.msra.mxu0 0.0
  %646 = vmatprep.subr.mxu0 0.0
  %647 = vmatpush1.msra.mxu0 0.0
  %648 = vmatprep.subr.mxu0 0.0
  %649 = vmatpush1.msra.mxu0 0.0
  %650 = vmatprep.subr.mxu0 0.0
  %651 = vmatpush1.msra.mxu0 0.0
  %652 = vmatprep.subr.mxu0 0.0
  %653 = vmatpush1.msra.mxu0 0.0
  %654 = vmatprep.subr.mxu0 0.0
  %655 = vmatpush1.msra.mxu0 0.0
  %656 = vmatprep.subr.mxu0 0.0
  %657 = vmatpush1.msra.mxu0 0.0
  %658 = vmatprep.subr.mxu0 0.0
  %659 = vmatpush1.msra.mxu0 0.0
  %660 = vmatprep.subr.mxu0 0.0
  %661 = vmatpush1.msra.mxu0 0.0
  %662 = vmatprep.subr.mxu0 0.0
  %663 = vmatpush1.msra.mxu0 0.0
  %664 = vmatprep.subr.mxu0 0.0
  %665 = vmatpush1.msra.mxu0 0.0
  %666 = vmatprep.subr.mxu0 0.0
  %667 = vmatpush1.msra.mxu0 0.0
  %668 = vmatprep.subr.mxu0 0.0
  %669 = vmatpush1.msra.mxu0 0.0
  %670 = vmatprep.subr.mxu0 0.0
  %671 = vmatpush1.msra.mxu0 0.0
  %672 = vmatprep.subr.mxu0 0.0
  %673 = vmatpush1.msra.mxu0 0.0
  %674 = vmatprep.subr.mxu0 0.0
  %675 = vmatpush1.msra.mxu0 0.0
  %676 = vmatprep.subr.mxu0 0.0
  %677 = vmatpush1.msra.mxu0 0.0
  %678 = vmatprep.subr.mxu0 0.0
  %679 = vmatpush1.msra.mxu0 0.0
  %680 = vmatprep.subr.mxu0 0.0
  %681 = vmatpush1.msra.mxu0 0.0
  %682 = vmatprep.subr.mxu0 0.0
  %683 = vmatpush1.msra.mxu0 0.0
  %684 = vmatprep.mubr.f32.mxu0 0.0
  %685 = vmatmul.mubr.f32.gmra.mrb[0].mxu0 %v618
  %v686 = vpop.f32.mrb[0].mxu0
  %v687 = vadd.f32 0.0, %v686
  %v688 = vpop.f32.mrb[0].mxu0
  %689 = vdwg.mxu0
  %v690 = vadd.f32 %v617, %v687
  %v691 = vmul.f32 %v690, 2.0
  %v692 = vsel %vm36, %v691, %v690
  %v693 = vxor.u32 %v692, 2147483648
  %v694 = vmul.f32 %v693, 1.442695
  %v695 = vpow.pop %v694
  %v696 = vadd.f32 %v695, 1.0
  %v697 = vrcp.pop %v696
  %v698 = vmul.f32 1.0, %v697
  %v699 = vmul.f32 %v698, 2.0
  %v700 = vsub.f32 %v699, 1.0
  %v701 = vsel %vm36, %v700, %v698
  %v702 = vmul.f32 %v701, %v605
  %704 = vrot.lane.b32.xlu0 %v701, 64
  %v705 = vpop.permute.xlu0 %704
  %v707 = vmul.f32 %v701, %v705
  %709 = vrot.lane.b32.xlu0 %v707, 32
  %v710 = vpop.permute.xlu0 %709
  %v712 = vadd.f32 %v702, %v710
  %v713 = vtanh.pop %v712
  %715 = vrot.lane.b32.xlu0 %v713, 64
  %v716 = vpop.permute.xlu0 %715
  %v718 = vmul.f32 %v701, %v716
  %720 = vrot.lane.b32.xlu0 %v718, 32
  %v721 = vpop.permute.xlu0 %720
  %723 = vst.msk [vmem:[#allocation3 + $0x20] sm:$0xff] %vm55, %v721
  %v724 = vld [vmem:[#allocation2 + $0x28] sm:$0xff]
  %v725 = vsel %vm55, %v721, 0
  %727 = vmatprep.subr.mxu0 0.0
  %728 = vmatpush1.msra.mxu0 %v184
  %729 = vmatprep.subr.mxu0 0.0
  %730 = vmatpush1.msra.mxu0 %v185
  %731 = vmatprep.subr.mxu0 0.0
  %732 = vmatpush1.msra.mxu0 %v186
  %733 = vmatprep.subr.mxu0 0.0
  %734 = vmatpush1.msra.mxu0 %v187
  %735 = vmatprep.subr.mxu0 0.0
  %736 = vmatpush1.msra.mxu0 0.0
  %737 = vmatprep.subr.mxu0 0.0
  %738 = vmatpush1.msra.mxu0 0.0
  %739 = vmatprep.subr.mxu0 0.0
  %740 = vmatpush1.msra.mxu0 0.0
  %741 = vmatprep.subr.mxu0 0.0
  %742 = vmatpush1.msra.mxu0 0.0
  %743 = vmatprep.subr.mxu0 0.0
  %744 = vmatpush1.msra.mxu0 0.0
  %745 = vmatprep.subr.mxu0 0.0
  %746 = vmatpush1.msra.mxu0 0.0
  %747 = vmatprep.subr.mxu0 0.0
  %748 = vmatpush1.msra.mxu0 0.0
  %749 = vmatprep.subr.mxu0 0.0
  %750 = vmatpush1.msra.mxu0 0.0
  %751 = vmatprep.subr.mxu0 0.0
  %752 = vmatpush1.msra.mxu0 0.0
  %753 = vmatprep.subr.mxu0 0.0
  %754 = vmatpush1.msra.mxu0 0.0
  %755 = vmatprep.subr.mxu0 0.0
  %756 = vmatpush1.msra.mxu0 0.0
  %757 = vmatprep.subr.mxu0 0.0
  %758 = vmatpush1.msra.mxu0 0.0
  %759 = vmatprep.subr.mxu0 0.0
  %760 = vmatpush1.msra.mxu0 0.0
  %761 = vmatprep.subr.mxu0 0.0
  %762 = vmatpush1.msra.mxu0 0.0
  %763 = vmatprep.subr.mxu0 0.0
  %764 = vmatpush1.msra.mxu0 0.0
  %765 = vmatprep.subr.mxu0 0.0
  %766 = vmatpush1.msra.mxu0 0.0
  %767 = vmatprep.subr.mxu0 0.0
  %768 = vmatpush1.msra.mxu0 0.0
  %769 = vmatprep.subr.mxu0 0.0
  %770 = vmatpush1.msra.mxu0 0.0
  %771 = vmatprep.subr.mxu0 0.0
  %772 = vmatpush1.msra.mxu0 0.0
  %773 = vmatprep.subr.mxu0 0.0
  %774 = vmatpush1.msra.mxu0 0.0
  %775 = vmatprep.subr.mxu0 0.0
  %776 = vmatpush1.msra.mxu0 0.0
  %777 = vmatprep.subr.mxu0 0.0
  %778 = vmatpush1.msra.mxu0 0.0
  %779 = vmatprep.subr.mxu0 0.0
  %780 = vmatpush1.msra.mxu0 0.0
  %781 = vmatprep.subr.mxu0 0.0
  %782 = vmatpush1.msra.mxu0 0.0
  %783 = vmatprep.subr.mxu0 0.0
  %784 = vmatpush1.msra.mxu0 0.0
  %785 = vmatprep.subr.mxu0 0.0
  %786 = vmatpush1.msra.mxu0 0.0
  %787 = vmatprep.subr.mxu0 0.0
  %788 = vmatpush1.msra.mxu0 0.0
  %789 = vmatprep.subr.mxu0 0.0
  %790 = vmatpush1.msra.mxu0 0.0
  %791 = vmatprep.mubr.f32.mxu0 0.0
  %792 = vmatmul.mubr.f32.gmra.mrb[0].mxu0 %v725
  %v793 = vpop.f32.mrb[0].mxu0
  %v794 = vadd.f32 0.0, %v793
  %v795 = vpop.f32.mrb[0].mxu0
  %796 = vdwg.mxu0
  %v797 = vadd.f32 %v724, %v794
  %v798 = vmul.f32 %v797, 2.0
  %v799 = vsel %vm36, %v798, %v797
  %v800 = vxor.u32 %v799, 2147483648
  %v801 = vmul.f32 %v800, 1.442695
  %v802 = vpow.pop %v801
  %v803 = vadd.f32 %v802, 1.0
  %v804 = vrcp.pop %v803
  %v805 = vmul.f32 1.0, %v804
  %v806 = vmul.f32 %v805, 2.0
  %v807 = vsub.f32 %v806, 1.0
  %v808 = vsel %vm36, %v807, %v805
  %v809 = vmul.f32 %v808, %v712
  %811 = vrot.lane.b32.xlu0 %v808, 64
  %v812 = vpop.permute.xlu0 %811
  %v814 = vmul.f32 %v808, %v812
  %816 = vrot.lane.b32.xlu0 %v814, 32
  %v817 = vpop.permute.xlu0 %816
  %v819 = vadd.f32 %v809, %v817
  %v820 = vtanh.pop %v819
  %822 = vrot.lane.b32.xlu0 %v820, 64
  %v823 = vpop.permute.xlu0 %822
  %v825 = vmul.f32 %v808, %v823
  %827 = vrot.lane.b32.xlu0 %v825, 32
  %v828 = vpop.permute.xlu0 %827
  %830 = vst.msk [vmem:[#allocation3 + $0x28] sm:$0xff] %vm55, %v828
  %v831 = vld [vmem:[#allocation2 + $0x30] sm:$0xff]
  %v832 = vsel %vm55, %v828, 0
  %834 = vmatprep.subr.mxu0 0.0
  %835 = vmatpush1.msra.mxu0 %v184
  %836 = vmatprep.subr.mxu0 0.0
  %837 = vmatpush1.msra.mxu0 %v185
  %838 = vmatprep.subr.mxu0 0.0
  %839 = vmatpush1.msra.mxu0 %v186
  %840 = vmatprep.subr.mxu0 0.0
  %841 = vmatpush1.msra.mxu0 %v187
  %842 = vmatprep.subr.mxu0 0.0
  %843 = vmatpush1.msra.mxu0 0.0
  %844 = vmatprep.subr.mxu0 0.0
  %845 = vmatpush1.msra.mxu0 0.0
  %846 = vmatprep.subr.mxu0 0.0
  %847 = vmatpush1.msra.mxu0 0.0
  %848 = vmatprep.subr.mxu0 0.0
  %849 = vmatpush1.msra.mxu0 0.0
  %850 = vmatprep.subr.mxu0 0.0
  %851 = vmatpush1.msra.mxu0 0.0
  %852 = vmatprep.subr.mxu0 0.0
  %853 = vmatpush1.msra.mxu0 0.0
  %854 = vmatprep.subr.mxu0 0.0
  %855 = vmatpush1.msra.mxu0 0.0
  %856 = vmatprep.subr.mxu0 0.0
  %857 = vmatpush1.msra.mxu0 0.0
  %858 = vmatprep.subr.mxu0 0.0
  %859 = vmatpush1.msra.mxu0 0.0
  %860 = vmatprep.subr.mxu0 0.0
  %861 = vmatpush1.msra.mxu0 0.0
  %862 = vmatprep.subr.mxu0 0.0
  %863 = vmatpush1.msra.mxu0 0.0
  %864 = vmatprep.subr.mxu0 0.0
  %865 = vmatpush1.msra.mxu0 0.0
  %866 = vmatprep.subr.mxu0 0.0
  %867 = vmatpush1.msra.mxu0 0.0
  %868 = vmatprep.subr.mxu0 0.0
  %869 = vmatpush1.msra.mxu0 0.0
  %870 = vmatprep.subr.mxu0 0.0
  %871 = vmatpush1.msra.mxu0 0.0
  %872 = vmatprep.subr.mxu0 0.0
  %873 = vmatpush1.msra.mxu0 0.0
  %874 = vmatprep.subr.mxu0 0.0
  %875 = vmatpush1.msra.mxu0 0.0
  %876 = vmatprep.subr.mxu0 0.0
  %877 = vmatpush1.msra.mxu0 0.0
  %878 = vmatprep.subr.mxu0 0.0
  %879 = vmatpush1.msra.mxu0 0.0
  %880 = vmatprep.subr.mxu0 0.0
  %881 = vmatpush1.msra.mxu0 0.0
  %882 = vmatprep.subr.mxu0 0.0
  %883 = vmatpush1.msra.mxu0 0.0
  %884 = vmatprep.subr.mxu0 0.0
  %885 = vmatpush1.msra.mxu0 0.0
  %886 = vmatprep.subr.mxu0 0.0
  %887 = vmatpush1.msra.mxu0 0.0
  %888 = vmatprep.subr.mxu0 0.0
  %889 = vmatpush1.msra.mxu0 0.0
  %890 = vmatprep.subr.mxu0 0.0
  %891 = vmatpush1.msra.mxu0 0.0
  %892 = vmatprep.subr.mxu0 0.0
  %893 = vmatpush1.msra.mxu0 0.0
  %894 = vmatprep.subr.mxu0 0.0
  %895 = vmatpush1.msra.mxu0 0.0
  %896 = vmatprep.subr.mxu0 0.0
  %897 = vmatpush1.msra.mxu0 0.0
  %898 = vmatprep.mubr.f32.mxu0 0.0
  %899 = vmatmul.mubr.f32.gmra.mrb[0].mxu0 %v832
  %v900 = vpop.f32.mrb[0].mxu0
  %v901 = vadd.f32 0.0, %v900
  %v902 = vpop.f32.mrb[0].mxu0
  %903 = vdwg.mxu0
  %v904 = vadd.f32 %v831, %v901
  %v905 = vmul.f32 %v904, 2.0
  %v906 = vsel %vm36, %v905, %v904
  %v907 = vxor.u32 %v906, 2147483648
  %v908 = vmul.f32 %v907, 1.442695
  %v909 = vpow.pop %v908
  %v910 = vadd.f32 %v909, 1.0
  %v911 = vrcp.pop %v910
  %v912 = vmul.f32 1.0, %v911
  %v913 = vmul.f32 %v912, 2.0
  %v914 = vsub.f32 %v913, 1.0
  %v915 = vsel %vm36, %v914, %v912
  %v916 = vmul.f32 %v915, %v819
  %918 = vrot.lane.b32.xlu0 %v915, 64
  %v919 = vpop.permute.xlu0 %918
  %v921 = vmul.f32 %v915, %v919
  %923 = vrot.lane.b32.xlu0 %v921, 32
  %v924 = vpop.permute.xlu0 %923
  %v926 = vadd.f32 %v916, %v924
  %v927 = vtanh.pop %v926
  %929 = vrot.lane.b32.xlu0 %v927, 64
  %v930 = vpop.permute.xlu0 %929
  %v932 = vmul.f32 %v915, %v930
  %934 = vrot.lane.b32.xlu0 %v932, 32
  %v935 = vpop.permute.xlu0 %934
  %937 = vst.msk [vmem:[#allocation3 + $0x30] sm:$0xff] %vm55, %v935
  %v938 = vld [vmem:[#allocation3] sm:$0xff]
  %v939 = vld [vmem:[#allocation3 + $0x8] sm:$0xff]
  %v940 = vld [vmem:[#allocation3 + $0x10] sm:$0xff]
  %v941 = vld [vmem:[#allocation3 + $0x18] sm:$0xff]
  %v942 = vld [vmem:[#allocation3 + $0x20] sm:$0xff]
  %v943 = vld [vmem:[#allocation3 + $0x28] sm:$0xff]
  %v944 = vld [vmem:[#allocation3 + $0x30] sm:$0xff]
  %v945 = vld [vmem:[%s4] sm:$0xff]
  %v946 = vld [vmem:[%s4 + $0x8] sm:$0xff]
  %v947 = vld [vmem:[%s4 + $0x10] sm:$0xff]
  %v948 = vld [vmem:[%s4 + $0x18] sm:$0xff]
  %v949 = vld [vmem:[%s6] sm:$0x1]
  %v951 = vlaneseq
  %v952 = vshrl.u32 %v951, 7
  %v953 = vsub.s32 0, %v952
  %v954 = vrot.slane %v949, %v953
  %v957 = vsel %vm55, %v938, 0
  %v960 = vsel %vm55, %v939, 0
  %v963 = vsel %vm55, %v940, 0
  %v966 = vsel %vm55, %v941, 0
  %v969 = vsel %vm55, %v942, 0
  %v972 = vsel %vm55, %v943, 0
  %v975 = vsel %vm55, %v944, 0
  %977 = vmatprep.subr.mxu0 0.0
  %978 = vmatpush1.msra.mxu0 %v945
  %979 = vmatprep.subr.mxu0 0.0
  %980 = vmatpush1.msra.mxu0 %v946
  %981 = vmatprep.subr.mxu0 0.0
  %982 = vmatpush1.msra.mxu0 %v947
  %983 = vmatprep.subr.mxu0 0.0
  %984 = vmatpush1.msra.mxu0 %v948
  %985 = vmatprep.subr.mxu0 0.0
  %986 = vmatpush1.msra.mxu0 0.0
  %987 = vmatprep.subr.mxu0 0.0
  %988 = vmatpush1.msra.mxu0 0.0
  %989 = vmatprep.subr.mxu0 0.0
  %990 = vmatpush1.msra.mxu0 0.0
  %991 = vmatprep.subr.mxu0 0.0
  %992 = vmatpush1.msra.mxu0 0.0
  %993 = vmatprep.subr.mxu0 0.0
  %994 = vmatpush1.msra.mxu0 0.0
  %995 = vmatprep.subr.mxu0 0.0
  %996 = vmatpush1.msra.mxu0 0.0
  %997 = vmatprep.subr.mxu0 0.0
  %998 = vmatpush1.msra.mxu0 0.0
  %999 = vmatprep.subr.mxu0 0.0
  %1000 = vmatpush1.msra.mxu0 0.0
  %1001 = vmatprep.subr.mxu0 0.0
  %1002 = vmatpush1.msra.mxu0 0.0
  %1003 = vmatprep.subr.mxu0 0.0
  %1004 = vmatpush1.msra.mxu0 0.0
  %1005 = vmatprep.subr.mxu0 0.0
  %1006 = vmatpush1.msra.mxu0 0.0
  %1007 = vmatprep.subr.mxu0 0.0
  %1008 = vmatpush1.msra.mxu0 0.0
  %1009 = vmatprep.subr.mxu0 0.0
  %1010 = vmatpush1.msra.mxu0 0.0
  %1011 = vmatprep.subr.mxu0 0.0
  %1012 = vmatpush1.msra.mxu0 0.0
  %1013 = vmatprep.subr.mxu0 0.0
  %1014 = vmatpush1.msra.mxu0 0.0
  %1015 = vmatprep.subr.mxu0 0.0
  %1016 = vmatpush1.msra.mxu0 0.0
  %1017 = vmatprep.subr.mxu0 0.0
  %1018 = vmatpush1.msra.mxu0 0.0
  %1019 = vmatprep.subr.mxu0 0.0
  %1020 = vmatpush1.msra.mxu0 0.0
  %1021 = vmatprep.subr.mxu0 0.0
  %1022 = vmatpush1.msra.mxu0 0.0
  %1023 = vmatprep.subr.mxu0 0.0
  %1024 = vmatpush1.msra.mxu0 0.0
  %1025 = vmatprep.subr.mxu0 0.0
  %1026 = vmatpush1.msra.mxu0 0.0
  %1027 = vmatprep.subr.mxu0 0.0
  %1028 = vmatpush1.msra.mxu0 0.0
  %1029 = vmatprep.subr.mxu0 0.0
  %1030 = vmatpush1.msra.mxu0 0.0
  %1031 = vmatprep.subr.mxu0 0.0
  %1032 = vmatpush1.msra.mxu0 0.0
  %1033 = vmatprep.subr.mxu0 0.0
  %1034 = vmatpush1.msra.mxu0 0.0
  %1035 = vmatprep.subr.mxu0 0.0
  %1036 = vmatpush1.msra.mxu0 0.0
  %1037 = vmatprep.subr.mxu0 0.0
  %1038 = vmatpush1.msra.mxu0 0.0
  %1039 = vmatprep.subr.mxu0 0.0
  %1040 = vmatpush1.msra.mxu0 0.0
  %1041 = vmatprep.mubr.f32.mxu0 0.0
  %1042 = vmatmul.mubr.f32.gmra.mrb[0].mxu0 %v957
  %v1043 = vpop.f32.mrb[0].mxu0
  %v1044 = vadd.f32 %v954, %v1043
  %v1045 = vpop.f32.mrb[0].mxu0
  %1046 = vmatprep.mubr.f32.mxu0 0.0
  %1047 = vmatmul.mubr.f32.gmra.mrb[0].mxu0 %v960
  %v1048 = vpop.f32.mrb[0].mxu0
  %v1049 = vadd.f32 %v954, %v1048
  %v1050 = vpop.f32.mrb[0].mxu0
  %1051 = vmatprep.mubr.f32.mxu0 0.0
  %1052 = vmatmul.mubr.f32.gmra.mrb[0].mxu0 %v963
  %v1053 = vpop.f32.mrb[0].mxu0
  %v1054 = vadd.f32 %v954, %v1053
  %v1055 = vpop.f32.mrb[0].mxu0
  %1056 = vmatprep.mubr.f32.mxu0 0.0
  %1057 = vmatmul.mubr.f32.gmra.mrb[0].mxu0 %v966
  %v1058 = vpop.f32.mrb[0].mxu0
  %v1059 = vadd.f32 %v954, %v1058
  %v1060 = vpop.f32.mrb[0].mxu0
  %1061 = vmatprep.mubr.f32.mxu0 0.0
  %1062 = vmatmul.mubr.f32.gmra.mrb[0].mxu0 %v969
  %v1063 = vpop.f32.mrb[0].mxu0
  %v1064 = vadd.f32 %v954, %v1063
  %v1065 = vpop.f32.mrb[0].mxu0
  %1066 = vmatprep.mubr.f32.mxu0 0.0
  %1067 = vmatmul.mubr.f32.gmra.mrb[0].mxu0 %v972
  %v1068 = vpop.f32.mrb[0].mxu0
  %v1069 = vadd.f32 %v954, %v1068
  %v1070 = vpop.f32.mrb[0].mxu0
  %1071 = vmatprep.mubr.f32.mxu0 0.0
  %1072 = vmatmul.mubr.f32.gmra.mrb[0].mxu0 %v975
  %v1073 = vpop.f32.mrb[0].mxu0
  %v1074 = vadd.f32 %v954, %v1073
  %v1075 = vpop.f32.mrb[0].mxu0
  %1076 = vdwg.mxu0
  %1077 = vst [vmem:[#allocation2] sm:$0xff] %v1044
  %1078 = vst [vmem:[#allocation2 + $0x8] sm:$0xff] %v1049
  %1079 = vst [vmem:[#allocation2 + $0x10] sm:$0xff] %v1054
  %1080 = vst [vmem:[#allocation2 + $0x18] sm:$0xff] %v1059
  %1081 = vst [vmem:[#allocation2 + $0x20] sm:$0xff] %v1064
  %1082 = vst [vmem:[#allocation2 + $0x28] sm:$0xff] %v1069
  %1083 = vst [vmem:[#allocation2 + $0x30] sm:$0xff] %v1074
  %v1084 = vld [vmem:[%s5] sm:$0xff]
  %v1085 = vld [vmem:[%s5 + $0x8] sm:$0xff]
  %v1086 = vld [vmem:[%s5 + $0x10] sm:$0xff]
  %v1087 = vld [vmem:[%s5 + $0x18] sm:$0xff]
  %v1088 = vld [vmem:[#allocation2] sm:$0xff]
  %1089 = vmatprep.subr.mxu0 0.0
  %1090 = vmatpush1.msra.mxu0 %v1084
  %1091 = vmatprep.subr.mxu0 0.0
  %1092 = vmatpush1.msra.mxu0 %v1085
  %1093 = vmatprep.subr.mxu0 0.0
  %1094 = vmatpush1.msra.mxu0 %v1086
  %1095 = vmatprep.subr.mxu0 0.0
  %1096 = vmatpush1.msra.mxu0 %v1087
  %1097 = vmatprep.subr.mxu0 0.0
  %1098 = vmatpush1.msra.mxu0 0.0
  %1099 = vmatprep.subr.mxu0 0.0
  %1100 = vmatpush1.msra.mxu0 0.0
  %1101 = vmatprep.subr.mxu0 0.0
  %1102 = vmatpush1.msra.mxu0 0.0
  %1103 = vmatprep.subr.mxu0 0.0
  %1104 = vmatpush1.msra.mxu0 0.0
  %1105 = vmatprep.subr.mxu0 0.0
  %1106 = vmatpush1.msra.mxu0 0.0
  %1107 = vmatprep.subr.mxu0 0.0
  %1108 = vmatpush1.msra.mxu0 0.0
  %1109 = vmatprep.subr.mxu0 0.0
  %1110 = vmatpush1.msra.mxu0 0.0
  %1111 = vmatprep.subr.mxu0 0.0
  %1112 = vmatpush1.msra.mxu0 0.0
  %1113 = vmatprep.subr.mxu0 0.0
  %1114 = vmatpush1.msra.mxu0 0.0
  %1115 = vmatprep.subr.mxu0 0.0
  %1116 = vmatpush1.msra.mxu0 0.0
  %1117 = vmatprep.subr.mxu0 0.0
  %1118 = vmatpush1.msra.mxu0 0.0
  %1119 = vmatprep.subr.mxu0 0.0
  %1120 = vmatpush1.msra.mxu0 0.0
  %1121 = vmatprep.subr.mxu0 0.0
  %1122 = vmatpush1.msra.mxu0 0.0
  %1123 = vmatprep.subr.mxu0 0.0
  %1124 = vmatpush1.msra.mxu0 0.0
  %1125 = vmatprep.subr.mxu0 0.0
  %1126 = vmatpush1.msra.mxu0 0.0
  %1127 = vmatprep.subr.mxu0 0.0
  %1128 = vmatpush1.msra.mxu0 0.0
  %1129 = vmatprep.subr.mxu0 0.0
  %1130 = vmatpush1.msra.mxu0 0.0
  %1131 = vmatprep.subr.mxu0 0.0
  %1132 = vmatpush1.msra.mxu0 0.0
  %1133 = vmatprep.subr.mxu0 0.0
  %1134 = vmatpush1.msra.mxu0 0.0
  %1135 = vmatprep.subr.mxu0 0.0
  %1136 = vmatpush1.msra.mxu0 0.0
  %1137 = vmatprep.subr.mxu0 0.0
  %1138 = vmatpush1.msra.mxu0 0.0
  %1139 = vmatprep.subr.mxu0 0.0
  %1140 = vmatpush1.msra.mxu0 0.0
  %1141 = vmatprep.subr.mxu0 0.0
  %1142 = vmatpush1.msra.mxu0 0.0
  %1143 = vmatprep.subr.mxu0 0.0
  %1144 = vmatpush1.msra.mxu0 0.0
  %1145 = vmatprep.subr.mxu0 0.0
  %1146 = vmatpush1.msra.mxu0 0.0
  %1147 = vmatprep.subr.mxu0 0.0
  %1148 = vmatpush1.msra.mxu0 0.0
  %1149 = vmatprep.subr.mxu0 0.0
  %1150 = vmatpush1.msra.mxu0 0.0
  %1151 = vmatprep.subr.mxu0 0.0
  %1152 = vmatpush1.msra.mxu0 0.0
  %1153 = vmatprep.mubr.f32.mxu0 0.0
  %1154 = vmatmul.mubr.f32.gmra.mrb[0].mxu0 %v190
  %v1155 = vpop.f32.mrb[0].mxu0
  %v1156 = vadd.f32 0.0, %v1155
  %v1157 = vpop.f32.mrb[0].mxu0
  %1158 = vdwg.mxu0
  %v1159 = vadd.f32 %v1088, %v1156
  %v1160 = vmul.f32 %v1159, 2.0
  %v1161 = vsel %vm36, %v1160, %v1159
  %v1162 = vxor.u32 %v1161, 2147483648
  %v1163 = vmul.f32 %v1162, 1.442695
  %v1164 = vpow.pop %v1163
  %v1165 = vadd.f32 %v1164, 1.0
  %v1166 = vrcp.pop %v1165
  %v1167 = vmul.f32 1.0, %v1166
  %v1168 = vmul.f32 %v1167, 2.0
  %v1169 = vsub.f32 %v1168, 1.0
  %v1170 = vsel %vm36, %v1169, %v1167
  %v1171 = vmul.f32 %v1170, 0.0
  %1173 = vrot.lane.b32.xlu0 %v1170, 64
  %v1174 = vpop.permute.xlu0 %1173
  %v1176 = vmul.f32 %v1170, %v1174
  %1178 = vrot.lane.b32.xlu0 %v1176, 32
  %v1179 = vpop.permute.xlu0 %1178
  %v1181 = vadd.f32 %v1171, %v1179
  %v1182 = vtanh.pop %v1181
  %1184 = vrot.lane.b32.xlu0 %v1182, 64
  %v1185 = vpop.permute.xlu0 %1184
  %v1187 = vmul.f32 %v1170, %v1185
  %v1188 = vld [vmem:[#allocation2 + $0x8] sm:$0xff]
  %1190 = vrot.lane.b32.xlu0 %v1187, 32
  %v1191 = vpop.permute.xlu0 %1190
  %v1192 = vsel %vm55, %v1191, 0
  %1194 = vmatprep.subr.mxu0 0.0
  %1195 = vmatpush1.msra.mxu0 %v1084
  %1196 = vmatprep.subr.mxu0 0.0
  %1197 = vmatpush1.msra.mxu0 %v1085
  %1198 = vmatprep.subr.mxu0 0.0
  %1199 = vmatpush1.msra.mxu0 %v1086
  %1200 = vmatprep.subr.mxu0 0.0
  %1201 = vmatpush1.msra.mxu0 %v1087
  %1202 = vmatprep.subr.mxu0 0.0
  %1203 = vmatpush1.msra.mxu0 0.0
  %1204 = vmatprep.subr.mxu0 0.0
  %1205 = vmatpush1.msra.mxu0 0.0
  %1206 = vmatprep.subr.mxu0 0.0
  %1207 = vmatpush1.msra.mxu0 0.0
  %1208 = vmatprep.subr.mxu0 0.0
  %1209 = vmatpush1.msra.mxu0 0.0
  %1210 = vmatprep.subr.mxu0 0.0
  %1211 = vmatpush1.msra.mxu0 0.0
  %1212 = vmatprep.subr.mxu0 0.0
  %1213 = vmatpush1.msra.mxu0 0.0
  %1214 = vmatprep.subr.mxu0 0.0
  %1215 = vmatpush1.msra.mxu0 0.0
  %1216 = vmatprep.subr.mxu0 0.0
  %1217 = vmatpush1.msra.mxu0 0.0
  %1218 = vmatprep.subr.mxu0 0.0
  %1219 = vmatpush1.msra.mxu0 0.0
  %1220 = vmatprep.subr.mxu0 0.0
  %1221 = vmatpush1.msra.mxu0 0.0
  %1222 = vmatprep.subr.mxu0 0.0
  %1223 = vmatpush1.msra.mxu0 0.0
  %1224 = vmatprep.subr.mxu0 0.0
  %1225 = vmatpush1.msra.mxu0 0.0
  %1226 = vmatprep.subr.mxu0 0.0
  %1227 = vmatpush1.msra.mxu0 0.0
  %1228 = vmatprep.subr.mxu0 0.0
  %1229 = vmatpush1.msra.mxu0 0.0
  %1230 = vmatprep.subr.mxu0 0.0
  %1231 = vmatpush1.msra.mxu0 0.0
  %1232 = vmatprep.subr.mxu0 0.0
  %1233 = vmatpush1.msra.mxu0 0.0
  %1234 = vmatprep.subr.mxu0 0.0
  %1235 = vmatpush1.msra.mxu0 0.0
  %1236 = vmatprep.subr.mxu0 0.0
  %1237 = vmatpush1.msra.mxu0 0.0
  %1238 = vmatprep.subr.mxu0 0.0
  %1239 = vmatpush1.msra.mxu0 0.0
  %1240 = vmatprep.subr.mxu0 0.0
  %1241 = vmatpush1.msra.mxu0 0.0
  %1242 = vmatprep.subr.mxu0 0.0
  %1243 = vmatpush1.msra.mxu0 0.0
  %1244 = vmatprep.subr.mxu0 0.0
  %1245 = vmatpush1.msra.mxu0 0.0
  %1246 = vmatprep.subr.mxu0 0.0
  %1247 = vmatpush1.msra.mxu0 0.0
  %1248 = vmatprep.subr.mxu0 0.0
  %1249 = vmatpush1.msra.mxu0 0.0
  %1250 = vmatprep.subr.mxu0 0.0
  %1251 = vmatpush1.msra.mxu0 0.0
  %1252 = vmatprep.subr.mxu0 0.0
  %1253 = vmatpush1.msra.mxu0 0.0
  %1254 = vmatprep.subr.mxu0 0.0
  %1255 = vmatpush1.msra.mxu0 0.0
  %1256 = vmatprep.subr.mxu0 0.0
  %1257 = vmatpush1.msra.mxu0 0.0
  %1258 = vmatprep.mubr.f32.mxu0 0.0
  %1259 = vmatmul.mubr.f32.gmra.mrb[0].mxu0 %v1192
  %v1260 = vpop.f32.mrb[0].mxu0
  %v1261 = vadd.f32 0.0, %v1260
  %v1262 = vpop.f32.mrb[0].mxu0
  %1263 = vdwg.mxu0
  %v1264 = vadd.f32 %v1188, %v1261
  %v1265 = vmul.f32 %v1264, 2.0
  %v1266 = vsel %vm36, %v1265, %v1264
  %v1267 = vxor.u32 %v1266, 2147483648
  %v1268 = vmul.f32 %v1267, 1.442695
  %v1269 = vpow.pop %v1268
  %v1270 = vadd.f32 %v1269, 1.0
  %v1271 = vrcp.pop %v1270
  %v1272 = vmul.f32 1.0, %v1271
  %v1273 = vmul.f32 %v1272, 2.0
  %v1274 = vsub.f32 %v1273, 1.0
  %v1275 = vsel %vm36, %v1274, %v1272
  %v1276 = vmul.f32 %v1275, %v1181
  %1278 = vrot.lane.b32.xlu0 %v1275, 64
  %v1279 = vpop.permute.xlu0 %1278
  %v1281 = vmul.f32 %v1275, %v1279
  %1283 = vrot.lane.b32.xlu0 %v1281, 32
  %v1284 = vpop.permute.xlu0 %1283
  %v1286 = vadd.f32 %v1276, %v1284
  %v1287 = vtanh.pop %v1286
  %1289 = vrot.lane.b32.xlu0 %v1287, 64
  %v1290 = vpop.permute.xlu0 %1289
  %v1292 = vmul.f32 %v1275, %v1290
  %1294 = vrot.lane.b32.xlu0 %v1292, 32
  %v1295 = vpop.permute.xlu0 %1294
  %1297 = vst.msk [vmem:[#allocation4 + $0x8] sm:$0xff] %vm55, %v1295
  %v1298 = vld [vmem:[#allocation2 + $0x10] sm:$0xff]
  %v1299 = vsel %vm55, %v1295, 0
  %1301 = vmatprep.subr.mxu0 0.0
  %1302 = vmatpush1.msra.mxu0 %v1084
  %1303 = vmatprep.subr.mxu0 0.0
  %1304 = vmatpush1.msra.mxu0 %v1085
  %1305 = vmatprep.subr.mxu0 0.0
  %1306 = vmatpush1.msra.mxu0 %v1086
  %1307 = vmatprep.subr.mxu0 0.0
  %1308 = vmatpush1.msra.mxu0 %v1087
  %1309 = vmatprep.subr.mxu0 0.0
  %1310 = vmatpush1.msra.mxu0 0.0
  %1311 = vmatprep.subr.mxu0 0.0
  %1312 = vmatpush1.msra.mxu0 0.0
  %1313 = vmatprep.subr.mxu0 0.0
  %1314 = vmatpush1.msra.mxu0 0.0
  %1315 = vmatprep.subr.mxu0 0.0
  %1316 = vmatpush1.msra.mxu0 0.0
  %1317 = vmatprep.subr.mxu0 0.0
  %1318 = vmatpush1.msra.mxu0 0.0
  %1319 = vmatprep.subr.mxu0 0.0
  %1320 = vmatpush1.msra.mxu0 0.0
  %1321 = vmatprep.subr.mxu0 0.0
  %1322 = vmatpush1.msra.mxu0 0.0
  %1323 = vmatprep.subr.mxu0 0.0
  %1324 = vmatpush1.msra.mxu0 0.0
  %1325 = vmatprep.subr.mxu0 0.0
  %1326 = vmatpush1.msra.mxu0 0.0
  %1327 = vmatprep.subr.mxu0 0.0
  %1328 = vmatpush1.msra.mxu0 0.0
  %1329 = vmatprep.subr.mxu0 0.0
  %1330 = vmatpush1.msra.mxu0 0.0
  %1331 = vmatprep.subr.mxu0 0.0
  %1332 = vmatpush1.msra.mxu0 0.0
  %1333 = vmatprep.subr.mxu0 0.0
  %1334 = vmatpush1.msra.mxu0 0.0
  %1335 = vmatprep.subr.mxu0 0.0
  %1336 = vmatpush1.msra.mxu0 0.0
  %1337 = vmatprep.subr.mxu0 0.0
  %1338 = vmatpush1.msra.mxu0 0.0
  %1339 = vmatprep.subr.mxu0 0.0
  %1340 = vmatpush1.msra.mxu0 0.0
  %1341 = vmatprep.subr.mxu0 0.0
  %1342 = vmatpush1.msra.mxu0 0.0
  %1343 = vmatprep.subr.mxu0 0.0
  %1344 = vmatpush1.msra.mxu0 0.0
  %1345 = vmatprep.subr.mxu0 0.0
  %1346 = vmatpush1.msra.mxu0 0.0
  %1347 = vmatprep.subr.mxu0 0.0
  %1348 = vmatpush1.msra.mxu0 0.0
  %1349 = vmatprep.subr.mxu0 0.0
  %1350 = vmatpush1.msra.mxu0 0.0
  %1351 = vmatprep.subr.mxu0 0.0
  %1352 = vmatpush1.msra.mxu0 0.0
  %1353 = vmatprep.subr.mxu0 0.0
  %1354 = vmatpush1.msra.mxu0 0.0
  %1355 = vmatprep.subr.mxu0 0.0
  %1356 = vmatpush1.msra.mxu0 0.0
  %1357 = vmatprep.subr.mxu0 0.0
  %1358 = vmatpush1.msra.mxu0 0.0
  %1359 = vmatprep.subr.mxu0 0.0
  %1360 = vmatpush1.msra.mxu0 0.0
  %1361 = vmatprep.subr.mxu0 0.0
  %1362 = vmatpush1.msra.mxu0 0.0
  %1363 = vmatprep.subr.mxu0 0.0
  %1364 = vmatpush1.msra.mxu0 0.0
  %1365 = vmatprep.mubr.f32.mxu0 0.0
  %1366 = vmatmul.mubr.f32.gmra.mrb[0].mxu0 %v1299
  %v1367 = vpop.f32.mrb[0].mxu0
  %v1368 = vadd.f32 0.0, %v1367
  %v1369 = vpop.f32.mrb[0].mxu0
  %1370 = vdwg.mxu0
  %v1371 = vadd.f32 %v1298, %v1368
  %v1372 = vmul.f32 %v1371, 2.0
  %v1373 = vsel %vm36, %v1372, %v1371
  %v1374 = vxor.u32 %v1373, 2147483648
  %v1375 = vmul.f32 %v1374, 1.442695
  %v1376 = vpow.pop %v1375
  %v1377 = vadd.f32 %v1376, 1.0
  %v1378 = vrcp.pop %v1377
  %v1379 = vmul.f32 1.0, %v1378
  %v1380 = vmul.f32 %v1379, 2.0
  %v1381 = vsub.f32 %v1380, 1.0
  %v1382 = vsel %vm36, %v1381, %v1379
  %v1383 = vmul.f32 %v1382, %v1286
  %1385 = vrot.lane.b32.xlu0 %v1382, 64
  %v1386 = vpop.permute.xlu0 %1385
  %v1388 = vmul.f32 %v1382, %v1386
  %1390 = vrot.lane.b32.xlu0 %v1388, 32
  %v1391 = vpop.permute.xlu0 %1390
  %v1393 = vadd.f32 %v1383, %v1391
  %v1394 = vtanh.pop %v1393
  %1396 = vrot.lane.b32.xlu0 %v1394, 64
  %v1397 = vpop.permute.xlu0 %1396
  %v1399 = vmul.f32 %v1382, %v1397
  %1401 = vrot.lane.b32.xlu0 %v1399, 32
  %v1402 = vpop.permute.xlu0 %1401
  %1404 = vst.msk [vmem:[#allocation4 + $0x10] sm:$0xff] %vm55, %v1402
  %v1405 = vld [vmem:[#allocation2 + $0x18] sm:$0xff]
  %v1406 = vsel %vm55, %v1402, 0
  %1408 = vmatprep.subr.mxu0 0.0
  %1409 = vmatpush1.msra.mxu0 %v1084
  %1410 = vmatprep.subr.mxu0 0.0
  %1411 = vmatpush1.msra.mxu0 %v1085
  %1412 = vmatprep.subr.mxu0 0.0
  %1413 = vmatpush1.msra.mxu0 %v1086
  %1414 = vmatprep.subr.mxu0 0.0
  %1415 = vmatpush1.msra.mxu0 %v1087
  %1416 = vmatprep.subr.mxu0 0.0
  %1417 = vmatpush1.msra.mxu0 0.0
  %1418 = vmatprep.subr.mxu0 0.0
  %1419 = vmatpush1.msra.mxu0 0.0
  %1420 = vmatprep.subr.mxu0 0.0
  %1421 = vmatpush1.msra.mxu0 0.0
  %1422 = vmatprep.subr.mxu0 0.0
  %1423 = vmatpush1.msra.mxu0 0.0
  %1424 = vmatprep.subr.mxu0 0.0
  %1425 = vmatpush1.msra.mxu0 0.0
  %1426 = vmatprep.subr.mxu0 0.0
  %1427 = vmatpush1.msra.mxu0 0.0
  %1428 = vmatprep.subr.mxu0 0.0
  %1429 = vmatpush1.msra.mxu0 0.0
  %1430 = vmatprep.subr.mxu0 0.0
  %1431 = vmatpush1.msra.mxu0 0.0
  %1432 = vmatprep.subr.mxu0 0.0
  %1433 = vmatpush1.msra.mxu0 0.0
  %1434 = vmatprep.subr.mxu0 0.0
  %1435 = vmatpush1.msra.mxu0 0.0
  %1436 = vmatprep.subr.mxu0 0.0
  %1437 = vmatpush1.msra.mxu0 0.0
  %1438 = vmatprep.subr.mxu0 0.0
  %1439 = vmatpush1.msra.mxu0 0.0
  %1440 = vmatprep.subr.mxu0 0.0
  %1441 = vmatpush1.msra.mxu0 0.0
  %1442 = vmatprep.subr.mxu0 0.0
  %1443 = vmatpush1.msra.mxu0 0.0
  %1444 = vmatprep.subr.mxu0 0.0
  %1445 = vmatpush1.msra.mxu0 0.0
  %1446 = vmatprep.subr.mxu0 0.0
  %1447 = vmatpush1.msra.mxu0 0.0
  %1448 = vmatprep.subr.mxu0 0.0
  %1449 = vmatpush1.msra.mxu0 0.0
  %1450 = vmatprep.subr.mxu0 0.0
  %1451 = vmatpush1.msra.mxu0 0.0
  %1452 = vmatprep.subr.mxu0 0.0
  %1453 = vmatpush1.msra.mxu0 0.0
  %1454 = vmatprep.subr.mxu0 0.0
  %1455 = vmatpush1.msra.mxu0 0.0
  %1456 = vmatprep.subr.mxu0 0.0
  %1457 = vmatpush1.msra.mxu0 0.0
  %1458 = vmatprep.subr.mxu0 0.0
  %1459 = vmatpush1.msra.mxu0 0.0
  %1460 = vmatprep.subr.mxu0 0.0
  %1461 = vmatpush1.msra.mxu0 0.0
  %1462 = vmatprep.subr.mxu0 0.0
  %1463 = vmatpush1.msra.mxu0 0.0
  %1464 = vmatprep.subr.mxu0 0.0
  %1465 = vmatpush1.msra.mxu0 0.0
  %1466 = vmatprep.subr.mxu0 0.0
  %1467 = vmatpush1.msra.mxu0 0.0
  %1468 = vmatprep.subr.mxu0 0.0
  %1469 = vmatpush1.msra.mxu0 0.0
  %1470 = vmatprep.subr.mxu0 0.0
  %1471 = vmatpush1.msra.mxu0 0.0
  %1472 = vmatprep.mubr.f32.mxu0 0.0
  %1473 = vmatmul.mubr.f32.gmra.mrb[0].mxu0 %v1406
  %v1474 = vpop.f32.mrb[0].mxu0
  %v1475 = vadd.f32 0.0, %v1474
  %v1476 = vpop.f32.mrb[0].mxu0
  %1477 = vdwg.mxu0
  %v1478 = vadd.f32 %v1405, %v1475
  %v1479 = vmul.f32 %v1478, 2.0
  %v1480 = vsel %vm36, %v1479, %v1478
  %v1481 = vxor.u32 %v1480, 2147483648
  %v1482 = vmul.f32 %v1481, 1.442695
  %v1483 = vpow.pop %v1482
  %v1484 = vadd.f32 %v1483, 1.0
  %v1485 = vrcp.pop %v1484
  %v1486 = vmul.f32 1.0, %v1485
  %v1487 = vmul.f32 %v1486, 2.0
  %v1488 = vsub.f32 %v1487, 1.0
  %v1489 = vsel %vm36, %v1488, %v1486
  %v1490 = vmul.f32 %v1489, %v1393
  %1492 = vrot.lane.b32.xlu0 %v1489, 64
  %v1493 = vpop.permute.xlu0 %1492
  %v1495 = vmul.f32 %v1489, %v1493
  %1497 = vrot.lane.b32.xlu0 %v1495, 32
  %v1498 = vpop.permute.xlu0 %1497
  %v1500 = vadd.f32 %v1490, %v1498
  %v1501 = vtanh.pop %v1500
  %1503 = vrot.lane.b32.xlu0 %v1501, 64
  %v1504 = vpop.permute.xlu0 %1503
  %v1506 = vmul.f32 %v1489, %v1504
  %1508 = vrot.lane.b32.xlu0 %v1506, 32
  %v1509 = vpop.permute.xlu0 %1508
  %1511 = vst.msk [vmem:[#allocation4 + $0x18] sm:$0xff] %vm55, %v1509
  %v1512 = vld [vmem:[#allocation2 + $0x20] sm:$0xff]
  %v1513 = vsel %vm55, %v1509, 0
  %1515 = vmatprep.subr.mxu0 0.0
  %1516 = vmatpush1.msra.mxu0 %v1084
  %1517 = vmatprep.subr.mxu0 0.0
  %1518 = vmatpush1.msra.mxu0 %v1085
  %1519 = vmatprep.subr.mxu0 0.0
  %1520 = vmatpush1.msra.mxu0 %v1086
  %1521 = vmatprep.subr.mxu0 0.0
  %1522 = vmatpush1.msra.mxu0 %v1087
  %1523 = vmatprep.subr.mxu0 0.0
  %1524 = vmatpush1.msra.mxu0 0.0
  %1525 = vmatprep.subr.mxu0 0.0
  %1526 = vmatpush1.msra.mxu0 0.0
  %1527 = vmatprep.subr.mxu0 0.0
  %1528 = vmatpush1.msra.mxu0 0.0
  %1529 = vmatprep.subr.mxu0 0.0
  %1530 = vmatpush1.msra.mxu0 0.0
  %1531 = vmatprep.subr.mxu0 0.0
  %1532 = vmatpush1.msra.mxu0 0.0
  %1533 = vmatprep.subr.mxu0 0.0
  %1534 = vmatpush1.msra.mxu0 0.0
  %1535 = vmatprep.subr.mxu0 0.0
  %1536 = vmatpush1.msra.mxu0 0.0
  %1537 = vmatprep.subr.mxu0 0.0
  %1538 = vmatpush1.msra.mxu0 0.0
  %1539 = vmatprep.subr.mxu0 0.0
  %1540 = vmatpush1.msra.mxu0 0.0
  %1541 = vmatprep.subr.mxu0 0.0
  %1542 = vmatpush1.msra.mxu0 0.0
  %1543 = vmatprep.subr.mxu0 0.0
  %1544 = vmatpush1.msra.mxu0 0.0
  %1545 = vmatprep.subr.mxu0 0.0
  %1546 = vmatpush1.msra.mxu0 0.0
  %1547 = vmatprep.subr.mxu0 0.0
  %1548 = vmatpush1.msra.mxu0 0.0
  %1549 = vmatprep.subr.mxu0 0.0
  %1550 = vmatpush1.msra.mxu0 0.0
  %1551 = vmatprep.subr.mxu0 0.0
  %1552 = vmatpush1.msra.mxu0 0.0
  %1553 = vmatprep.subr.mxu0 0.0
  %1554 = vmatpush1.msra.mxu0 0.0
  %1555 = vmatprep.subr.mxu0 0.0
  %1556 = vmatpush1.msra.mxu0 0.0
  %1557 = vmatprep.subr.mxu0 0.0
  %1558 = vmatpush1.msra.mxu0 0.0
  %1559 = vmatprep.subr.mxu0 0.0
  %1560 = vmatpush1.msra.mxu0 0.0
  %1561 = vmatprep.subr.mxu0 0.0
  %1562 = vmatpush1.msra.mxu0 0.0
  %1563 = vmatprep.subr.mxu0 0.0
  %1564 = vmatpush1.msra.mxu0 0.0
  %1565 = vmatprep.subr.mxu0 0.0
  %1566 = vmatpush1.msra.mxu0 0.0
  %1567 = vmatprep.subr.mxu0 0.0
  %1568 = vmatpush1.msra.mxu0 0.0
  %1569 = vmatprep.subr.mxu0 0.0
  %1570 = vmatpush1.msra.mxu0 0.0
  %1571 = vmatprep.subr.mxu0 0.0
  %1572 = vmatpush1.msra.mxu0 0.0
  %1573 = vmatprep.subr.mxu0 0.0
  %1574 = vmatpush1.msra.mxu0 0.0
  %1575 = vmatprep.subr.mxu0 0.0
  %1576 = vmatpush1.msra.mxu0 0.0
  %1577 = vmatprep.subr.mxu0 0.0
  %1578 = vmatpush1.msra.mxu0 0.0
  %1579 = vmatprep.mubr.f32.mxu0 0.0
  %1580 = vmatmul.mubr.f32.gmra.mrb[0].mxu0 %v1513
  %v1581 = vpop.f32.mrb[0].mxu0
  %v1582 = vadd.f32 0.0, %v1581
  %v1583 = vpop.f32.mrb[0].mxu0
  %1584 = vdwg.mxu0
  %v1585 = vadd.f32 %v1512, %v1582
  %v1586 = vmul.f32 %v1585, 2.0
  %v1587 = vsel %vm36, %v1586, %v1585
  %v1588 = vxor.u32 %v1587, 2147483648
  %v1589 = vmul.f32 %v1588, 1.442695
  %v1590 = vpow.pop %v1589
  %v1591 = vadd.f32 %v1590, 1.0
  %v1592 = vrcp.pop %v1591
  %v1593 = vmul.f32 1.0, %v1592
  %v1594 = vmul.f32 %v1593, 2.0
  %v1595 = vsub.f32 %v1594, 1.0
  %v1596 = vsel %vm36, %v1595, %v1593
  %v1597 = vmul.f32 %v1596, %v1500
  %1599 = vrot.lane.b32.xlu0 %v1596, 64
  %v1600 = vpop.permute.xlu0 %1599
  %v1602 = vmul.f32 %v1596, %v1600
  %1604 = vrot.lane.b32.xlu0 %v1602, 32
  %v1605 = vpop.permute.xlu0 %1604
  %v1607 = vadd.f32 %v1597, %v1605
  %v1608 = vtanh.pop %v1607
  %1610 = vrot.lane.b32.xlu0 %v1608, 64
  %v1611 = vpop.permute.xlu0 %1610
  %v1613 = vmul.f32 %v1596, %v1611
  %1615 = vrot.lane.b32.xlu0 %v1613, 32
  %v1616 = vpop.permute.xlu0 %1615
  %1618 = vst.msk [vmem:[#allocation4 + $0x20] sm:$0xff] %vm55, %v1616
  %v1619 = vld [vmem:[#allocation2 + $0x28] sm:$0xff]
  %v1620 = vsel %vm55, %v1616, 0
  %1622 = vmatprep.subr.mxu0 0.0
  %1623 = vmatpush1.msra.mxu0 %v1084
  %1624 = vmatprep.subr.mxu0 0.0
  %1625 = vmatpush1.msra.mxu0 %v1085
  %1626 = vmatprep.subr.mxu0 0.0
  %1627 = vmatpush1.msra.mxu0 %v1086
  %1628 = vmatprep.subr.mxu0 0.0
  %1629 = vmatpush1.msra.mxu0 %v1087
  %1630 = vmatprep.subr.mxu0 0.0
  %1631 = vmatpush1.msra.mxu0 0.0
  %1632 = vmatprep.subr.mxu0 0.0
  %1633 = vmatpush1.msra.mxu0 0.0
  %1634 = vmatprep.subr.mxu0 0.0
  %1635 = vmatpush1.msra.mxu0 0.0
  %1636 = vmatprep.subr.mxu0 0.0
  %1637 = vmatpush1.msra.mxu0 0.0
  %1638 = vmatprep.subr.mxu0 0.0
  %1639 = vmatpush1.msra.mxu0 0.0
  %1640 = vmatprep.subr.mxu0 0.0
  %1641 = vmatpush1.msra.mxu0 0.0
  %1642 = vmatprep.subr.mxu0 0.0
  %1643 = vmatpush1.msra.mxu0 0.0
  %1644 = vmatprep.subr.mxu0 0.0
  %1645 = vmatpush1.msra.mxu0 0.0
  %1646 = vmatprep.subr.mxu0 0.0
  %1647 = vmatpush1.msra.mxu0 0.0
  %1648 = vmatprep.subr.mxu0 0.0
  %1649 = vmatpush1.msra.mxu0 0.0
  %1650 = vmatprep.subr.mxu0 0.0
  %1651 = vmatpush1.msra.mxu0 0.0
  %1652 = vmatprep.subr.mxu0 0.0
  %1653 = vmatpush1.msra.mxu0 0.0
  %1654 = vmatprep.subr.mxu0 0.0
  %1655 = vmatpush1.msra.mxu0 0.0
  %1656 = vmatprep.subr.mxu0 0.0
  %1657 = vmatpush1.msra.mxu0 0.0
  %1658 = vmatprep.subr.mxu0 0.0
  %1659 = vmatpush1.msra.mxu0 0.0
  %1660 = vmatprep.subr.mxu0 0.0
  %1661 = vmatpush1.msra.mxu0 0.0
  %1662 = vmatprep.subr.mxu0 0.0
  %1663 = vmatpush1.msra.mxu0 0.0
  %1664 = vmatprep.subr.mxu0 0.0
  %1665 = vmatpush1.msra.mxu0 0.0
  %1666 = vmatprep.subr.mxu0 0.0
  %1667 = vmatpush1.msra.mxu0 0.0
  %1668 = vmatprep.subr.mxu0 0.0
  %1669 = vmatpush1.msra.mxu0 0.0
  %1670 = vmatprep.subr.mxu0 0.0
  %1671 = vmatpush1.msra.mxu0 0.0
  %1672 = vmatprep.subr.mxu0 0.0
  %1673 = vmatpush1.msra.mxu0 0.0
  %1674 = vmatprep.subr.mxu0 0.0
  %1675 = vmatpush1.msra.mxu0 0.0
  %1676 = vmatprep.subr.mxu0 0.0
  %1677 = vmatpush1.msra.mxu0 0.0
  %1678 = vmatprep.subr.mxu0 0.0
  %1679 = vmatpush1.msra.mxu0 0.0
  %1680 = vmatprep.subr.mxu0 0.0
  %1681 = vmatpush1.msra.mxu0 0.0
  %1682 = vmatprep.subr.mxu0 0.0
  %1683 = vmatpush1.msra.mxu0 0.0
  %1684 = vmatprep.subr.mxu0 0.0
  %1685 = vmatpush1.msra.mxu0 0.0
  %1686 = vmatprep.mubr.f32.mxu0 0.0
  %1687 = vmatmul.mubr.f32.gmra.mrb[0].mxu0 %v1620
  %v1688 = vpop.f32.mrb[0].mxu0
  %v1689 = vadd.f32 0.0, %v1688
  %v1690 = vpop.f32.mrb[0].mxu0
  %1691 = vdwg.mxu0
  %v1692 = vadd.f32 %v1619, %v1689
  %v1693 = vmul.f32 %v1692, 2.0
  %v1694 = vsel %vm36, %v1693, %v1692
  %v1695 = vxor.u32 %v1694, 2147483648
  %v1696 = vmul.f32 %v1695, 1.442695
  %v1697 = vpow.pop %v1696
  %v1698 = vadd.f32 %v1697, 1.0
  %v1699 = vrcp.pop %v1698
  %v1700 = vmul.f32 1.0, %v1699
  %v1701 = vmul.f32 %v1700, 2.0
  %v1702 = vsub.f32 %v1701, 1.0
  %v1703 = vsel %vm36, %v1702, %v1700
  %v1704 = vmul.f32 %v1703, %v1607
  %1706 = vrot.lane.b32.xlu0 %v1703, 64
  %v1707 = vpop.permute.xlu0 %1706
  %v1709 = vmul.f32 %v1703, %v1707
  %1711 = vrot.lane.b32.xlu0 %v1709, 32
  %v1712 = vpop.permute.xlu0 %1711
  %v1714 = vadd.f32 %v1704, %v1712
  %v1715 = vtanh.pop %v1714
  %1717 = vrot.lane.b32.xlu0 %v1715, 64
  %v1718 = vpop.permute.xlu0 %1717
  %v1720 = vmul.f32 %v1703, %v1718
  %1722 = vrot.lane.b32.xlu0 %v1720, 32
  %v1723 = vpop.permute.xlu0 %1722
  %1725 = vst.msk [vmem:[#allocation4 + $0x28] sm:$0xff] %vm55, %v1723
  %v1726 = vld [vmem:[#allocation2 + $0x30] sm:$0xff]
  %v1727 = vsel %vm55, %v1723, 0
  %1729 = vmatprep.subr.mxu0 0.0
  %1730 = vmatpush1.msra.mxu0 %v1084
  %1731 = vmatprep.subr.mxu0 0.0
  %1732 = vmatpush1.msra.mxu0 %v1085
  %1733 = vmatprep.subr.mxu0 0.0
  %1734 = vmatpush1.msra.mxu0 %v1086
  %1735 = vmatprep.subr.mxu0 0.0
  %1736 = vmatpush1.msra.mxu0 %v1087
  %1737 = vmatprep.subr.mxu0 0.0
  %1738 = vmatpush1.msra.mxu0 0.0
  %1739 = vmatprep.subr.mxu0 0.0
  %1740 = vmatpush1.msra.mxu0 0.0
  %1741 = vmatprep.subr.mxu0 0.0
  %1742 = vmatpush1.msra.mxu0 0.0
  %1743 = vmatprep.subr.mxu0 0.0
  %1744 = vmatpush1.msra.mxu0 0.0
  %1745 = vmatprep.subr.mxu0 0.0
  %1746 = vmatpush1.msra.mxu0 0.0
  %1747 = vmatprep.subr.mxu0 0.0
  %1748 = vmatpush1.msra.mxu0 0.0
  %1749 = vmatprep.subr.mxu0 0.0
  %1750 = vmatpush1.msra.mxu0 0.0
  %1751 = vmatprep.subr.mxu0 0.0
  %1752 = vmatpush1.msra.mxu0 0.0
  %1753 = vmatprep.subr.mxu0 0.0
  %1754 = vmatpush1.msra.mxu0 0.0
  %1755 = vmatprep.subr.mxu0 0.0
  %1756 = vmatpush1.msra.mxu0 0.0
  %1757 = vmatprep.subr.mxu0 0.0
  %1758 = vmatpush1.msra.mxu0 0.0
  %1759 = vmatprep.subr.mxu0 0.0
  %1760 = vmatpush1.msra.mxu0 0.0
  %1761 = vmatprep.subr.mxu0 0.0
  %1762 = vmatpush1.msra.mxu0 0.0
  %1763 = vmatprep.subr.mxu0 0.0
  %1764 = vmatpush1.msra.mxu0 0.0
  %1765 = vmatprep.subr.mxu0 0.0
  %1766 = vmatpush1.msra.mxu0 0.0
  %1767 = vmatprep.subr.mxu0 0.0
  %1768 = vmatpush1.msra.mxu0 0.0
  %1769 = vmatprep.subr.mxu0 0.0
  %1770 = vmatpush1.msra.mxu0 0.0
  %1771 = vmatprep.subr.mxu0 0.0
  %1772 = vmatpush1.msra.mxu0 0.0
  %1773 = vmatprep.subr.mxu0 0.0
  %1774 = vmatpush1.msra.mxu0 0.0
  %1775 = vmatprep.subr.mxu0 0.0
  %1776 = vmatpush1.msra.mxu0 0.0
  %1777 = vmatprep.subr.mxu0 0.0
  %1778 = vmatpush1.msra.mxu0 0.0
  %1779 = vmatprep.subr.mxu0 0.0
  %1780 = vmatpush1.msra.mxu0 0.0
  %1781 = vmatprep.subr.mxu0 0.0
  %1782 = vmatpush1.msra.mxu0 0.0
  %1783 = vmatprep.subr.mxu0 0.0
  %1784 = vmatpush1.msra.mxu0 0.0
  %1785 = vmatprep.subr.mxu0 0.0
  %1786 = vmatpush1.msra.mxu0 0.0
  %1787 = vmatprep.subr.mxu0 0.0
  %1788 = vmatpush1.msra.mxu0 0.0
  %1789 = vmatprep.subr.mxu0 0.0
  %1790 = vmatpush1.msra.mxu0 0.0
  %1791 = vmatprep.subr.mxu0 0.0
  %1792 = vmatpush1.msra.mxu0 0.0
  %1793 = vmatprep.mubr.f32.mxu0 0.0
  %1794 = vmatmul.mubr.f32.gmra.mrb[0].mxu0 %v1727
  %v1795 = vpop.f32.mrb[0].mxu0
  %v1796 = vadd.f32 0.0, %v1795
  %v1797 = vpop.f32.mrb[0].mxu0
  %1798 = vdwg.mxu0
  %v1799 = vadd.f32 %v1726, %v1796
  %v1800 = vmul.f32 %v1799, 2.0
  %v1801 = vsel %vm36, %v1800, %v1799
  %v1802 = vxor.u32 %v1801, 2147483648
  %v1803 = vmul.f32 %v1802, 1.442695
  %v1804 = vpow.pop %v1803
  %v1805 = vadd.f32 %v1804, 1.0
  %v1806 = vrcp.pop %v1805
  %v1807 = vmul.f32 1.0, %v1806
  %v1808 = vmul.f32 %v1807, 2.0
  %v1809 = vsub.f32 %v1808, 1.0
  %v1810 = vsel %vm36, %v1809, %v1807
  %v1811 = vmul.f32 %v1810, %v1714
  %1813 = vrot.lane.b32.xlu0 %v1810, 64
  %v1814 = vpop.permute.xlu0 %1813
  %v1816 = vmul.f32 %v1810, %v1814
  %1818 = vrot.lane.b32.xlu0 %v1816, 32
  %v1819 = vpop.permute.xlu0 %1818
  %v1821 = vadd.f32 %v1811, %v1819
  %v1822 = vtanh.pop %v1821
  %1824 = vrot.lane.b32.xlu0 %v1822, 64
  %v1825 = vpop.permute.xlu0 %1824
  %v1827 = vmul.f32 %v1810, %v1825
  %1829 = vrot.lane.b32.xlu0 %v1827, 32
  %v1830 = vpop.permute.xlu0 %1829
  %1832 = vst.msk [vmem:[#allocation4 + $0x30] sm:$0xff] %vm55, %v1830
  %v1833 = vld [vmem:[#allocation4 + $0x8] sm:$0xff]
  %v1834 = vld [vmem:[#allocation4 + $0x10] sm:$0xff]
  %v1835 = vld [vmem:[#allocation4 + $0x18] sm:$0xff]
  %v1836 = vld [vmem:[#allocation4 + $0x20] sm:$0xff]
  %v1837 = vld [vmem:[#allocation4 + $0x28] sm:$0xff]
  %v1838 = vld [vmem:[#allocation4 + $0x30] sm:$0xff]
  %v1839 = vld [vmem:[%s7] sm:$0xff]
  %v1840 = vld [vmem:[%s7 + $0x8] sm:$0xff]
  %v1841 = vld [vmem:[%s7 + $0x10] sm:$0xff]
  %v1842 = vld [vmem:[%s7 + $0x18] sm:$0xff]
  %v1843 = vld [vmem:[%s8] sm:$0x1]
  %v1845 = vlaneseq
  %v1846 = vshrl.u32 %v1845, 7
  %v1847 = vsub.s32 0, %v1846
  %v1848 = vrot.slane %v1843, %v1847
  %v1851 = vsel %vm55, %v1833, 0
  %v1854 = vsel %vm55, %v1834, 0
  %v1857 = vsel %vm55, %v1835, 0
  %v1860 = vsel %vm55, %v1836, 0
  %v1863 = vsel %vm55, %v1837, 0
  %v1866 = vsel %vm55, %v1838, 0
  %1868 = vmatprep.subr.mxu0 0.0
  %1869 = vmatpush1.msra.mxu0 %v1839
  %1870 = vmatprep.subr.mxu0 0.0
  %1871 = vmatpush1.msra.mxu0 %v1840
  %1872 = vmatprep.subr.mxu0 0.0
  %1873 = vmatpush1.msra.mxu0 %v1841
  %1874 = vmatprep.subr.mxu0 0.0
  %1875 = vmatpush1.msra.mxu0 %v1842
  %1876 = vmatprep.subr.mxu0 0.0
  %1877 = vmatpush1.msra.mxu0 0.0
  %1878 = vmatprep.subr.mxu0 0.0
  %1879 = vmatpush1.msra.mxu0 0.0
  %1880 = vmatprep.subr.mxu0 0.0
  %1881 = vmatpush1.msra.mxu0 0.0
  %1882 = vmatprep.subr.mxu0 0.0
  %1883 = vmatpush1.msra.mxu0 0.0
  %1884 = vmatprep.subr.mxu0 0.0
  %1885 = vmatpush1.msra.mxu0 0.0
  %1886 = vmatprep.subr.mxu0 0.0
  %1887 = vmatpush1.msra.mxu0 0.0
  %1888 = vmatprep.subr.mxu0 0.0
  %1889 = vmatpush1.msra.mxu0 0.0
  %1890 = vmatprep.subr.mxu0 0.0
  %1891 = vmatpush1.msra.mxu0 0.0
  %1892 = vmatprep.subr.mxu0 0.0
  %1893 = vmatpush1.msra.mxu0 0.0
  %1894 = vmatprep.subr.mxu0 0.0
  %1895 = vmatpush1.msra.mxu0 0.0
  %1896 = vmatprep.subr.mxu0 0.0
  %1897 = vmatpush1.msra.mxu0 0.0
  %1898 = vmatprep.subr.mxu0 0.0
  %1899 = vmatpush1.msra.mxu0 0.0
  %1900 = vmatprep.subr.mxu0 0.0
  %1901 = vmatpush1.msra.mxu0 0.0
  %1902 = vmatprep.subr.mxu0 0.0
  %1903 = vmatpush1.msra.mxu0 0.0
  %1904 = vmatprep.subr.mxu0 0.0
  %1905 = vmatpush1.msra.mxu0 0.0
  %1906 = vmatprep.subr.mxu0 0.0
  %1907 = vmatpush1.msra.mxu0 0.0
  %1908 = vmatprep.subr.mxu0 0.0
  %1909 = vmatpush1.msra.mxu0 0.0
  %1910 = vmatprep.subr.mxu0 0.0
  %1911 = vmatpush1.msra.mxu0 0.0
  %1912 = vmatprep.subr.mxu0 0.0
  %1913 = vmatpush1.msra.mxu0 0.0
  %1914 = vmatprep.subr.mxu0 0.0
  %1915 = vmatpush1.msra.mxu0 0.0
  %1916 = vmatprep.subr.mxu0 0.0
  %1917 = vmatpush1.msra.mxu0 0.0
  %1918 = vmatprep.subr.mxu0 0.0
  %1919 = vmatpush1.msra.mxu0 0.0
  %1920 = vmatprep.subr.mxu0 0.0
  %1921 = vmatpush1.msra.mxu0 0.0
  %1922 = vmatprep.subr.mxu0 0.0
  %1923 = vmatpush1.msra.mxu0 0.0
  %1924 = vmatprep.subr.mxu0 0.0
  %1925 = vmatpush1.msra.mxu0 0.0
  %1926 = vmatprep.subr.mxu0 0.0
  %1927 = vmatpush1.msra.mxu0 0.0
  %1928 = vmatprep.subr.mxu0 0.0
  %1929 = vmatpush1.msra.mxu0 0.0
  %1930 = vmatprep.subr.mxu0 0.0
  %1931 = vmatpush1.msra.mxu0 0.0
  %1932 = vmatprep.mubr.f32.mxu0 0.0
  %1933 = vmatmul.mubr.f32.gmra.mrb[0].mxu0 %v1851
  %v1934 = vpop.f32.mrb[0].mxu0
  %v1935 = vadd.f32 %v1848, %v1934
  %v1936 = vpop.f32.mrb[0].mxu0
  %1937 = vmatprep.mubr.f32.mxu0 0.0
  %1938 = vmatmul.mubr.f32.gmra.mrb[0].mxu0 %v1854
  %v1939 = vpop.f32.mrb[0].mxu0
  %v1940 = vadd.f32 %v1848, %v1939
  %v1941 = vpop.f32.mrb[0].mxu0
  %1942 = vmatprep.mubr.f32.mxu0 0.0
  %1943 = vmatmul.mubr.f32.gmra.mrb[0].mxu0 %v1857
  %v1944 = vpop.f32.mrb[0].mxu0
  %v1945 = vadd.f32 %v1848, %v1944
  %v1946 = vpop.f32.mrb[0].mxu0
  %1947 = vmatprep.mubr.f32.mxu0 0.0
  %1948 = vmatmul.mubr.f32.gmra.mrb[0].mxu0 %v1860
  %v1949 = vpop.f32.mrb[0].mxu0
  %v1950 = vadd.f32 %v1848, %v1949
  %v1951 = vpop.f32.mrb[0].mxu0
  %1952 = vmatprep.mubr.f32.mxu0 0.0
  %1953 = vmatmul.mubr.f32.gmra.mrb[0].mxu0 %v1863
  %v1954 = vpop.f32.mrb[0].mxu0
  %v1955 = vadd.f32 %v1848, %v1954
  %v1956 = vpop.f32.mrb[0].mxu0
  %1957 = vmatprep.mubr.f32.mxu0 0.0
  %1958 = vmatmul.mubr.f32.gmra.mrb[0].mxu0 %v1866
  %v1959 = vpop.f32.mrb[0].mxu0
  %v1960 = vadd.f32 %v1848, %v1959
  %v1961 = vpop.f32.mrb[0].mxu0
  %1962 = vdwg.mxu0
  %1963 = vst [vmem:[%s9] sm:$0xff] %v1935
  %1964 = vst [vmem:[%s9 + $0x8] sm:$0xff] %v1940
  %1965 = vst [vmem:[%s9 + $0x10] sm:$0xff] %v1945
  %1966 = vst [vmem:[%s9 + $0x18] sm:$0xff] %v1950
  %1967 = vst [vmem:[%s9 + $0x20] sm:$0xff] %v1955
  %1968 = vst [vmem:[%s9 + $0x28] sm:$0xff] %v1960
  // Predicated region
  $region38: #{decoder_forward.1} parent=0 // pred_check
    _
  $region39: #{decoder_forward.1} parent=0 // pred_check_branch
    %1970 = sbr.rel (0) target = $region41
  $region40: #{decoder_forward.1} parent=0 // pred_region
    _
  $region41: #{decoder_forward.1} parent=0 // pred_fallthru
    _
  // Predicated region
  $region42: #{decoder_forward.1} parent=0 // pred_check
    _
  $region43: #{decoder_forward.1} parent=0 // pred_check_branch
    %1972 = sbr.rel (0) target = $region45
  $region44: #{decoder_forward.1} parent=0 // pred_region
    _
  $region45: #{decoder_forward.1} parent=0 // pred_fallthru
    _

</llo_original>
